<compile_context>
chip_gen: v5e
topology: v5e:2x2
jax: 0.10.0
libtpu: 0.0.40
codegen_flags: <defaults>
</compile_context>

<pallas_src>
import functools

import jax
import jax.numpy as jnp
from jax import lax
from jax.experimental import pallas as pl
from jax.experimental.pallas import tpu as pltpu


# ---------------------------------------------------------------------------
# Kernel body (shared by all layer variants)
# ---------------------------------------------------------------------------

def _lstm_layer_kernel(*refs, pre_projected, with_ln, unroll):
    """One (batch-tile, time-chunk) grid step of an LSTM layer.

    Ref layout (inputs, outputs, scratch -- entries in [] are conditional):
      inputs : x_or_xg, [w_ih (bf16)], w_hh (bf16), [bias], [gamma, beta]
      outputs: y (bf16, with_ln) | h_out (f32, final layer)
      scratch: [xg (f32)], h (f32), c (f32), [hseq (f32)]
    """
    it = iter(refs)
    x_ref = next(it)
    wih_ref = None if pre_projected else next(it)
    whh_ref = next(it)
    b_ref = None if pre_projected else next(it)
    gamma_ref = next(it) if with_ln else None
    beta_ref = next(it) if with_ln else None
    out_ref = next(it)
    xg_ref = x_ref if pre_projected else next(it)
    h_ref = next(it)
    c_ref = next(it)
    hseq_ref = next(it) if with_ln else None

    j = pl.program_id(1)

    @pl.when(j == 0)
    def _init():
        h_ref[...] = jnp.zeros_like(h_ref)
        c_ref[...] = jnp.zeros_like(c_ref)

    TB, H = h_ref.shape
    n_steps = x_ref.shape[0]

    if not pre_projected:
        # One tall bf16 MXU matmul (f32 accumulate) for the whole chunk's input
        # projection; bias is folded in here once per chunk (not per timestep).
        xg_ref[...] = lax.dot_general(
            x_ref[...].astype(jnp.bfloat16), wih_ref[...],
            dimension_numbers=(((2,), (0,)), ((), ())),
            preferred_element_type=jnp.float32) + b_ref[...]

    w_hh = whh_ref[...]                     # (H, 4H) bf16, loaded once

    def step(t, carry):
        h, c = carry
        gates = xg_ref[t] + jnp.dot(h.astype(jnp.bfloat16), w_hh,
                                    preferred_element_type=jnp.float32)
        # PyTorch gate order: i, f, g, o (free lane-tile views when H % 128 == 0).
        i_g = jax.nn.sigmoid(gates[:, 0 * H:1 * H])
        f_g = jax.nn.sigmoid(gates[:, 1 * H:2 * H])
        g_g = jnp.tanh(gates[:, 2 * H:3 * H])
        o_g = jax.nn.sigmoid(gates[:, 3 * H:4 * H])
        c_new = f_g * c + i_g * g_g
        h_new = o_g * jnp.tanh(c_new)
        if with_ln:
            hseq_ref[t, :, :] = h_new       # raw h_t; LayerNorm is a block epilogue
        return (h_new, c_new)

    h_f, c_f = lax.fori_loop(0, n_steps, step, (h_ref[...], c_ref[...]),
                             unroll=unroll)
    h_ref[...] = h_f
    c_ref[...] = c_f

    if with_ln:
        # Block-level LayerNorm (two-pass variance) + bf16 writeback.
        hseq = hseq_ref[...]
        mu = jnp.mean(hseq, axis=-1, keepdims=True)
        d = hseq - mu
        var = jnp.mean(d * d, axis=-1, keepdims=True)
        ln = d * lax.rsqrt(var + 1e-5)
        out_ref[...] = (ln * gamma_ref[...] + beta_ref[...]).astype(out_ref.dtype)
    else:
        @pl.when(j == pl.num_programs(1) - 1)
        def _finalize():
            out_ref[...] = h_f.astype(out_ref.dtype)


# ---------------------------------------------------------------------------
# Tiling / VMEM budget helpers
# ---------------------------------------------------------------------------

def _physical_vmem_bytes():
    try:
        info = pltpu.get_tpu_info()
        v = getattr(info, "vmem_capacity_bytes", None)
        if v:
            return int(v)
    except Exception:
        pass
    return 64 << 20          # conservative fallback (v7x per-core VMEM)


def _invariant_spec(shape):
    """BlockSpec for a grid-invariant operand; single-buffered (no wasted VMEM)."""
    idx = lambda i, j, _n=len(shape): (0,) * _n
    try:
        return pl.BlockSpec(shape, idx, pipeline_mode=pl.Buffered(1))
    except TypeError:
        return pl.BlockSpec(shape, idx)


def _pick_batch_tile(Bp):
    # Prefer >= 2 tiles so the "parallel" axis can shard across v7x's 2 cores.
    for tb in (256, 128, 64, 32, 16, 8):
        if Bp % tb == 0 and Bp // tb >= 2:
            return tb
    for tb in (256, 128, 64, 32, 16, 8):
        if Bp % tb == 0:
            return tb
    return Bp


def _vmem_estimate(TC, TB, Din, H, x_itemsize, *, pre_projected, with_ln):
    f32, bf16 = 4, 2
    GH = 4 * H
    din_eff = max(Din, 128)                      # lane padding of the input block
    est = 2 * TC * TB * din_eff * x_itemsize     # double-buffered input chunk
    est += H * GH * bf16                         # w_hh (single-buffered)
    if not pre_projected:
        est += Din * GH * bf16 + GH * f32        # w_ih + bias (single-buffered)
        est += TC * TB * GH * f32                # xg scratch
    if with_ln:
        est += 2 * H * f32                       # gamma, beta
        est += 2 * TC * TB * H * bf16            # double-buffered y block (bf16)
        est += TC * TB * H * f32                 # hseq scratch
    else:
        est += 2 * TB * H * f32                  # h_out block
    est += 2 * TB * H * f32                      # h/c carries
    return est


def _pick_time_chunk(T, TB, Din, H, x_itemsize, phys, **flags):
    budget = int(phys * 0.7)
    best = 1
    for cand in range(1, T + 1):
        if T % cand == 0 and _vmem_estimate(cand, TB, Din, H, x_itemsize,
                                            **flags) <= budget:
            best = cand
    return best


# ---------------------------------------------------------------------------
# Per-layer pallas_call wrapper
# ---------------------------------------------------------------------------

def _lstm_layer(x, w_ih_bf16, w_hh_bf16, b, gamma, beta, *, pre_projected, with_ln):
    """x: (T, Bp, Din) time-major (or (T, Bp, 4H) pre-projected gates).

    Returns (T, Bp, H) bf16 LayerNorm(LSTM(x)) when with_ln, else (Bp, H) f32 h_T.
    """
    T, Bp, Din = x.shape
    H = w_hh_bf16.shape[0]
    GH = 4 * H

    TB = _pick_batch_tile(Bp)
    phys = _physical_vmem_bytes()
    x_itemsize = jnp.dtype(x.dtype).itemsize
    TC = _pick_time_chunk(T, TB, Din, H, x_itemsize, phys,
                          pre_projected=pre_projected, with_ln=with_ln)
    unroll = TC if TC <= 16 else max(u for u in (8, 4, 2, 1) if TC % u == 0)

    kernel = functools.partial(_lstm_layer_kernel, pre_projected=pre_projected,
                               with_ln=with_ln, unroll=unroll)

    in_specs = [pl.BlockSpec((TC, TB, Din), lambda i, j: (j, i, 0))]
    inputs = [x]
    if not pre_projected:
        in_specs.append(_invariant_spec((Din, GH)))
        inputs.append(w_ih_bf16)
    in_specs.append(_invariant_spec((H, GH)))
    inputs.append(w_hh_bf16)
    if not pre_projected:
        in_specs.append(_invariant_spec((1, GH)))
        inputs.append(b)
    if with_ln:
        in_specs.append(_invariant_spec((1, H)))
        inputs.append(gamma)
        in_specs.append(_invariant_spec((1, H)))
        inputs.append(beta)

    if with_ln:
        out_specs = pl.BlockSpec((TC, TB, H), lambda i, j: (j, i, 0))
        out_shape = jax.ShapeDtypeStruct((T, Bp, H), jnp.bfloat16)
    else:
        out_specs = pl.BlockSpec((TB, H), lambda i, j: (i, 0))
        out_shape = jax.ShapeDtypeStruct((Bp, H), jnp.float32)

    scratch = []
    if not pre_projected:
        scratch.append(pltpu.VMEM((TC, TB, GH), jnp.float32))   # x @ W_ih (+b)
    scratch.append(pltpu.VMEM((TB, H), jnp.float32))            # h carry
    scratch.append(pltpu.VMEM((TB, H), jnp.float32))            # c carry
    if with_ln:
        scratch.append(pltpu.VMEM((TC, TB, H), jnp.float32))    # raw h_t sequence

    est = _vmem_estimate(TC, TB, Din, H, x_itemsize,
                         pre_projected=pre_projected, with_ln=with_ln)
    vmem_limit = int(min(max(est + (8 << 20), 32 << 20), int(phys * 0.9)))

    return pl.pallas_call(
        kernel,
        grid=(Bp // TB, T // TC),
        in_specs=in_specs,
        out_specs=out_specs,
        out_shape=out_shape,
        scratch_shapes=scratch,
        compiler_params=pltpu.CompilerParams(
            dimension_semantics=("parallel", "arbitrary"),
            vmem_limit_bytes=vmem_limit),
    )(*inputs)


# ---------------------------------------------------------------------------
# Parameters & forward
# ---------------------------------------------------------------------------

def init_lstm_graph_params(key, input_dim, hidden_dim, num_layers):
    """PyTorch-shaped init: LSTM U(-1/sqrt(H), 1/sqrt(H)); LayerNorm gamma=1, beta=0."""
    params = []
    k = 1.0 / float(jnp.sqrt(jnp.float32(hidden_dim)))
    for layer in range(num_layers):
        d_in = input_dim if layer == 0 else hidden_dim
        key, k1, k2, k3, k4 = jax.random.split(key, 5)
        w_ih = jax.random.uniform(k1, (4 * hidden_dim, d_in), jnp.float32, -k, k)
        w_hh = jax.random.uniform(k2, (4 * hidden_dim, hidden_dim), jnp.float32, -k, k)
        b_ih = jax.random.uniform(k3, (4 * hidden_dim,), jnp.float32, -k, k)
        b_hh = jax.random.uniform(k4, (4 * hidden_dim,), jnp.float32, -k, k)
        params.append(dict(
            w_ih_t=jnp.transpose(w_ih),                    # (Din, 4H) f32 master copy
            w_hh_t=jnp.transpose(w_hh),                    # (H, 4H)  f32 master copy
            b=(b_ih + b_hh).reshape(1, 4 * hidden_dim),    # (1, 4H)
            gamma=jnp.ones((1, hidden_dim), jnp.float32),
            beta=jnp.zeros((1, hidden_dim), jnp.float32),
        ))
    return params


@jax.jit
def lstm_graph_forward(x, params):
    """Forward pass of LSTM_Graph.

    x: (B, T, input_dim) batch-first (nn.LSTM(batch_first=True)).
    Returns h_n of the LAST stacked LSTM layer, shape (1, B, H).
    """
    B = x.shape[0]
    # Time-major inside kernels; pad batch to a sublane multiple of 8.  Padded
    # rows are independent and discarded at the end.
    xt = jnp.transpose(x, (1, 0, 2))
    b_pad = -(-B // 8) * 8
    if b_pad != B:
        xt = jnp.pad(xt, ((0, 0), (0, b_pad - B), (0, 0)))

    n = len(params)
    h_last = None
    for li, p in enumerate(params):
        d_in = xt.shape[-1]
        pre_projected = (li == 0 and d_in < 128)
        if pre_projected:
            # Tiny-K layer-0 projection hoisted to one exact f32 XLA matmul;
            # bias folded in so the kernel sees ready-to-use gate preactivations.
            xt_in = (jnp.einsum("tbd,dg->tbg", xt.astype(jnp.float32), p["w_ih_t"],
                                precision=lax.Precision.HIGHEST) + p["b"])
        else:
            xt_in = xt
        with_ln = (li < n - 1)
        out = _lstm_layer(xt_in,
                          p["w_ih_t"].astype(jnp.bfloat16),
                          p["w_hh_t"].astype(jnp.bfloat16),
                          p["b"], p["gamma"], p["beta"],
                          pre_projected=pre_projected, with_ln=with_ln)
        if with_ln:
            xt = out          # (T, Bp, H) bf16 -> next layer's input
        else:
            # Last layer: PyTorch returns its raw h_n; LN / sequence output is dead.
            h_last = out
    # TODO(synk): stochastic dropout (p > 0, training) between layers would use
    # pltpu.prng_seed/prng_random_bits; dropout=0.0 / eval (identity) assumed here.
    return h_last[None, :B, :]


# ---------------------------------------------------------------------------
# Pure-JAX f32 reference (correctness check only)
# ---------------------------------------------------------------------------

def _reference_forward(x, params):
    def lstm_layer(x_btd, p):
        B = x_btd.shape[0]
        H = p["w_hh_t"].shape[0]
        x_tbd = jnp.transpose(x_btd, (1, 0, 2))

        def step(carry, x_t):
            h, c = carry
            gates = (jnp.dot(x_t, p["w_ih_t"], precision=lax.Precision.HIGHEST)
                     + jnp.dot(h, p["w_hh_t"], precision=lax.Precision.HIGHEST)
                     + p["b"][0])
            i_g = jax.nn.sigmoid(gates[:, 0 * H:1 * H])
            f_g = jax.nn.sigmoid(gates[:, 1 * H:2 * H])
            g_g = jnp.tanh(gates[:, 2 * H:3 * H])
            o_g = jax.nn.sigmoid(gates[:, 3 * H:4 * H])
            c_new = f_g * c + i_g * g_g
            h_new = o_g * jnp.tanh(c_new)
            return (h_new, c_new), h_new

        init = (jnp.zeros((B, H), jnp.float32), jnp.zeros((B, H), jnp.float32))
        (h_f, _), ys = lax.scan(step, init, x_tbd)
        return jnp.transpose(ys, (1, 0, 2)), h_f

    h_last = None
    for p in params:
        y, h_last = lstm_layer(x, p)
        mu = jnp.mean(y, axis=-1, keepdims=True)
        var = jnp.mean((y - mu) ** 2, axis=-1, keepdims=True)
        x = (y - mu) / jnp.sqrt(var + 1e-5) * p["gamma"][0] + p["beta"][0]
    return h_last[None]


if __name__ == "__main__":
    B, T, INPUT_DIM, HIDDEN, NUM_LAYERS = 2, 8, 4, 32, 2

    key = jax.random.PRNGKey(0)
    kx, kp = jax.random.split(key)
    x = jax.random.normal(kx, (B, T, INPUT_DIM), jnp.float32)
    params = init_lstm_graph_params(kp, INPUT_DIM, HIDDEN, NUM_LAYERS)

    h_n = lstm_graph_forward(x, params)
    jax.block_until_ready(h_n)

    assert h_n.shape == (1, B, HIDDEN), h_n.shape
    assert h_n.dtype == jnp.float32

    # bf16 MXU operands + bf16 inter-layer activations vs. an f32 reference:
    # tolerance relaxed accordingly (structural errors are O(0.1-1)).
    h_ref = _reference_forward(x, params)
    max_err = float(jnp.max(jnp.abs(h_n - h_ref)))
    assert jnp.allclose(h_n, h_ref, rtol=2e-2, atol=2e-2), max_err

    print("KERNEL_OK")
</pallas_src>

<mosaic_0001>
module attributes {stable_mosaic.version = 11 : i64} {
  func.func @_lstm_layer_kernel(%arg0: i32, %arg1: i32, %arg2: memref<8x8x128xf32, #tpu.memory_space<vmem>>, %arg3: memref<32x128xbf16, #tpu.memory_space<vmem>>, %arg4: memref<1x32xf32, #tpu.memory_space<vmem>>, %arg5: memref<1x32xf32, #tpu.memory_space<vmem>>, %arg6: memref<8x8x32xbf16, #tpu.memory_space<vmem>>, %arg7: memref<8x32xf32, #tpu.memory_space<vmem>>, %arg8: memref<8x32xf32, #tpu.memory_space<vmem>>, %arg9: memref<8x8x32xf32, #tpu.memory_space<vmem>>) attributes {dimension_semantics = [#tpu.dimension_semantics<parallel>, #tpu.dimension_semantics<arbitrary>], iteration_bounds = array<i64: 1, 1>, scalar_prefetch = 0 : i64, scratch_operands = 3 : i64, tpu.core_type = #tpu.core_type<tc>, window_params = [{transform_indices = @transform_0, window_bounds = array<i64: 8, 8, 128>}, {pipeline_mode = #tpu.pipeline_mode<synchronous>, transform_indices = @transform_1, window_bounds = array<i64: 32, 128>}, {pipeline_mode = #tpu.pipeline_mode<synchronous>, transform_indices = @transform_2, window_bounds = array<i64: 1, 32>}, {pipeline_mode = #tpu.pipeline_mode<synchronous>, transform_indices = @transform_3, window_bounds = array<i64: 1, 32>}, {transform_indices = @transform_4, window_bounds = array<i64: 8, 8, 32>}]} {
    %c0_i32 = arith.constant 0 : i32
    %0 = arith.cmpi eq, %arg1, %c0_i32 : i32
    %1 = arith.extui %0 : i1 to i32
    %c0_i32_0 = arith.constant 0 : i32
    %2 = arith.cmpi ne, %1, %c0_i32_0 : i32
    scf.if %2 {
      %cst_89 = arith.constant 0.000000e+00 : f32
      %315 = vector.broadcast %cst_89 : f32 to vector<8x32xf32>
      %c0_90 = arith.constant 0 : index
      %c0_91 = arith.constant 0 : index
      %316 = vector.load %arg7[%c0_90, %c0_91] : memref<8x32xf32, #tpu.memory_space<vmem>>, vector<8x32xf32>
      tpu.vector_store %arg7[%c0_90, %c0_91], %315 {strides = array<i32>} : memref<8x32xf32, #tpu.memory_space<vmem>>, vector<8x32xf32>,
      %cst_92 = arith.constant 0.000000e+00 : f32
      %317 = vector.broadcast %cst_92 : f32 to vector<8x32xf32>
      %c0_93 = arith.constant 0 : index
      %c0_94 = arith.constant 0 : index
      %318 = vector.load %arg8[%c0_93, %c0_94] : memref<8x32xf32, #tpu.memory_space<vmem>>, vector<8x32xf32>
      tpu.vector_store %arg8[%c0_93, %c0_94], %317 {strides = array<i32>} : memref<8x32xf32, #tpu.memory_space<vmem>>, vector<8x32xf32>,
    } else {
    }
    %c0 = arith.constant 0 : index
    %c0_1 = arith.constant 0 : index
    %3 = vector.load %arg3[%c0, %c0_1] : memref<32x128xbf16, #tpu.memory_space<vmem>>, vector<32x128xbf16>
    %c0_2 = arith.constant 0 : index
    %c0_3 = arith.constant 0 : index
    %4 = vector.load %arg7[%c0_2, %c0_3] : memref<8x32xf32, #tpu.memory_space<vmem>>, vector<8x32xf32>
    %c0_4 = arith.constant 0 : index
    %c0_5 = arith.constant 0 : index
    %5 = vector.load %arg8[%c0_4, %c0_5] : memref<8x32xf32, #tpu.memory_space<vmem>>, vector<8x32xf32>
    %c0_i32_6 = arith.constant 0 : i32
    %6 = arith.index_cast %c0_i32_6 : i32 to index
    %c0_7 = arith.constant 0 : index
    %c0_8 = arith.constant 0 : index
    %7 = vector.load %arg2[%6, %c0_7, %c0_8] : memref<8x8x128xf32, #tpu.memory_space<vmem>>, vector<1x8x128xf32>
    %8 = vector.shape_cast %7 : vector<1x8x128xf32> to vector<8x128xf32>
    %9 = arith.truncf %4 : vector<8x32xf32> to vector<8x32xbf16>
    %cst = arith.constant dense<0.000000e+00> : vector<8x128xf32>
    %10 = tpu.matmul %9, %3, %cst {dimension_numbers = #tpu.dot_dimension_numbers<[1], [0], [0], [1], [0, 0, 1, 1], [], []>} : vector<8x32xbf16>, vector<32x128xbf16>, vector<8x128xf32> -> vector<8x128xf32>
    %11 = arith.addf %8, %10 : vector<8x128xf32>
    %12 = vector.extract_strided_slice %11 {offsets = [0, 0], sizes = [8, 32], strides = [1, 1]} : vector<8x128xf32> to vector<8x32xf32>
    %13 = arith.negf %12 : vector<8x32xf32>
    %14 = math.exp %13 : vector<8x32xf32>
    %cst_9 = arith.constant 1.000000e+00 : f32
    %15 = vector.broadcast %cst_9 : f32 to vector<8x32xf32>
    %16 = arith.addf %15, %14 : vector<8x32xf32>
    %17 = arith.divf %15, %16 : vector<8x32xf32>
    %18 = vector.extract_strided_slice %11 {offsets = [0, 32], sizes = [8, 32], strides = [1, 1]} : vector<8x128xf32> to vector<8x32xf32>
    %19 = arith.negf %18 : vector<8x32xf32>
    %20 = math.exp %19 : vector<8x32xf32>
    %cst_10 = arith.constant 1.000000e+00 : f32
    %21 = vector.broadcast %cst_10 : f32 to vector<8x32xf32>
    %22 = arith.addf %21, %20 : vector<8x32xf32>
    %23 = arith.divf %21, %22 : vector<8x32xf32>
    %24 = vector.extract_strided_slice %11 {offsets = [0, 64], sizes = [8, 32], strides = [1, 1]} : vector<8x128xf32> to vector<8x32xf32>
    %25 = math.tanh %24 : vector<8x32xf32>
    %26 = vector.extract_strided_slice %11 {offsets = [0, 96], sizes = [8, 32], strides = [1, 1]} : vector<8x128xf32> to vector<8x32xf32>
    %27 = arith.negf %26 : vector<8x32xf32>
    %28 = math.exp %27 : vector<8x32xf32>
    %cst_11 = arith.constant 1.000000e+00 : f32
    %29 = vector.broadcast %cst_11 : f32 to vector<8x32xf32>
    %30 = arith.addf %29, %28 : vector<8x32xf32>
    %31 = arith.divf %29, %30 : vector<8x32xf32>
    %32 = arith.mulf %23, %5 : vector<8x32xf32>
    %33 = arith.mulf %17, %25 : vector<8x32xf32>
    %34 = arith.addf %32, %33 : vector<8x32xf32>
    %35 = math.tanh %34 : vector<8x32xf32>
    %36 = arith.mulf %31, %35 : vector<8x32xf32>
    %37 = arith.index_cast %c0_i32_6 : i32 to index
    %c0_12 = arith.constant 0 : index
    %c0_13 = arith.constant 0 : index
    %38 = vector.load %arg9[%37, %c0_12, %c0_13] : memref<8x8x32xf32, #tpu.memory_space<vmem>>, vector<1x8x32xf32>
    %39 = vector.shape_cast %38 : vector<1x8x32xf32> to vector<8x32xf32>
    %40 = vector.shape_cast %36 : vector<8x32xf32> to vector<1x8x32xf32>
    tpu.vector_store %arg9[%37, %c0_12, %c0_13], %40 {strides = array<i32>} : memref<8x8x32xf32, #tpu.memory_space<vmem>>, vector<1x8x32xf32>,
    %c1_i32 = arith.constant 1 : i32
    %41 = arith.index_cast %c1_i32 : i32 to index
    %c0_14 = arith.constant 0 : index
    %c0_15 = arith.constant 0 : index
    %42 = vector.load %arg2[%41, %c0_14, %c0_15] : memref<8x8x128xf32, #tpu.memory_space<vmem>>, vector<1x8x128xf32>
    %43 = vector.shape_cast %42 : vector<1x8x128xf32> to vector<8x128xf32>
    %44 = arith.truncf %36 : vector<8x32xf32> to vector<8x32xbf16>
    %cst_16 = arith.constant dense<0.000000e+00> : vector<8x128xf32>
    %45 = tpu.matmul %44, %3, %cst_16 {dimension_numbers = #tpu.dot_dimension_numbers<[1], [0], [0], [1], [0, 0, 1, 1], [], []>} : vector<8x32xbf16>, vector<32x128xbf16>, vector<8x128xf32> -> vector<8x128xf32>
    %46 = arith.addf %43, %45 : vector<8x128xf32>
    %47 = vector.extract_strided_slice %46 {offsets = [0, 0], sizes = [8, 32], strides = [1, 1]} : vector<8x128xf32> to vector<8x32xf32>
    %48 = arith.negf %47 : vector<8x32xf32>
    %49 = math.exp %48 : vector<8x32xf32>
    %cst_17 = arith.constant 1.000000e+00 : f32
    %50 = vector.broadcast %cst_17 : f32 to vector<8x32xf32>
    %51 = arith.addf %50, %49 : vector<8x32xf32>
    %52 = arith.divf %50, %51 : vector<8x32xf32>
    %53 = vector.extract_strided_slice %46 {offsets = [0, 32], sizes = [8, 32], strides = [1, 1]} : vector<8x128xf32> to vector<8x32xf32>
    %54 = arith.negf %53 : vector<8x32xf32>
    %55 = math.exp %54 : vector<8x32xf32>
    %cst_18 = arith.constant 1.000000e+00 : f32
    %56 = vector.broadcast %cst_18 : f32 to vector<8x32xf32>
    %57 = arith.addf %56, %55 : vector<8x32xf32>
    %58 = arith.divf %56, %57 : vector<8x32xf32>
    %59 = vector.extract_strided_slice %46 {offsets = [0, 64], sizes = [8, 32], strides = [1, 1]} : vector<8x128xf32> to vector<8x32xf32>
    %60 = math.tanh %59 : vector<8x32xf32>
    %61 = vector.extract_strided_slice %46 {offsets = [0, 96], sizes = [8, 32], strides = [1, 1]} : vector<8x128xf32> to vector<8x32xf32>
    %62 = arith.negf %61 : vector<8x32xf32>
    %63 = math.exp %62 : vector<8x32xf32>
    %cst_19 = arith.constant 1.000000e+00 : f32
    %64 = vector.broadcast %cst_19 : f32 to vector<8x32xf32>
    %65 = arith.addf %64, %63 : vector<8x32xf32>
    %66 = arith.divf %64, %65 : vector<8x32xf32>
    %67 = arith.mulf %58, %34 : vector<8x32xf32>
    %68 = arith.mulf %52, %60 : vector<8x32xf32>
    %69 = arith.addf %67, %68 : vector<8x32xf32>
    %70 = math.tanh %69 : vector<8x32xf32>
    %71 = arith.mulf %66, %70 : vector<8x32xf32>
    %72 = arith.index_cast %c1_i32 : i32 to index
    %c0_20 = arith.constant 0 : index
    %c0_21 = arith.constant 0 : index
    %73 = vector.load %arg9[%72, %c0_20, %c0_21] : memref<8x8x32xf32, #tpu.memory_space<vmem>>, vector<1x8x32xf32>
    %74 = vector.shape_cast %73 : vector<1x8x32xf32> to vector<8x32xf32>
    %75 = vector.shape_cast %71 : vector<8x32xf32> to vector<1x8x32xf32>
    tpu.vector_store %arg9[%72, %c0_20, %c0_21], %75 {strides = array<i32>} : memref<8x8x32xf32, #tpu.memory_space<vmem>>, vector<1x8x32xf32>,
    %c2_i32 = arith.constant 2 : i32
    %76 = arith.index_cast %c2_i32 : i32 to index
    %c0_22 = arith.constant 0 : index
    %c0_23 = arith.constant 0 : index
    %77 = vector.load %arg2[%76, %c0_22, %c0_23] : memref<8x8x128xf32, #tpu.memory_space<vmem>>, vector<1x8x128xf32>
    %78 = vector.shape_cast %77 : vector<1x8x128xf32> to vector<8x128xf32>
    %79 = arith.truncf %71 : vector<8x32xf32> to vector<8x32xbf16>
    %cst_24 = arith.constant dense<0.000000e+00> : vector<8x128xf32>
    %80 = tpu.matmul %79, %3, %cst_24 {dimension_numbers = #tpu.dot_dimension_numbers<[1], [0], [0], [1], [0, 0, 1, 1], [], []>} : vector<8x32xbf16>, vector<32x128xbf16>, vector<8x128xf32> -> vector<8x128xf32>
    %81 = arith.addf %78, %80 : vector<8x128xf32>
    %82 = vector.extract_strided_slice %81 {offsets = [0, 0], sizes = [8, 32], strides = [1, 1]} : vector<8x128xf32> to vector<8x32xf32>
    %83 = arith.negf %82 : vector<8x32xf32>
    %84 = math.exp %83 : vector<8x32xf32>
    %cst_25 = arith.constant 1.000000e+00 : f32
    %85 = vector.broadcast %cst_25 : f32 to vector<8x32xf32>
    %86 = arith.addf %85, %84 : vector<8x32xf32>
    %87 = arith.divf %85, %86 : vector<8x32xf32>
    %88 = vector.extract_strided_slice %81 {offsets = [0, 32], sizes = [8, 32], strides = [1, 1]} : vector<8x128xf32> to vector<8x32xf32>
    %89 = arith.negf %88 : vector<8x32xf32>
    %90 = math.exp %89 : vector<8x32xf32>
    %cst_26 = arith.constant 1.000000e+00 : f32
    %91 = vector.broadcast %cst_26 : f32 to vector<8x32xf32>
    %92 = arith.addf %91, %90 : vector<8x32xf32>
    %93 = arith.divf %91, %92 : vector<8x32xf32>
    %94 = vector.extract_strided_slice %81 {offsets = [0, 64], sizes = [8, 32], strides = [1, 1]} : vector<8x128xf32> to vector<8x32xf32>
    %95 = math.tanh %94 : vector<8x32xf32>
    %96 = vector.extract_strided_slice %81 {offsets = [0, 96], sizes = [8, 32], strides = [1, 1]} : vector<8x128xf32> to vector<8x32xf32>
    %97 = arith.negf %96 : vector<8x32xf32>
    %98 = math.exp %97 : vector<8x32xf32>
    %cst_27 = arith.constant 1.000000e+00 : f32
    %99 = vector.broadcast %cst_27 : f32 to vector<8x32xf32>
    %100 = arith.addf %99, %98 : vector<8x32xf32>
    %101 = arith.divf %99, %100 : vector<8x32xf32>
    %102 = arith.mulf %93, %69 : vector<8x32xf32>
    %103 = arith.mulf %87, %95 : vector<8x32xf32>
    %104 = arith.addf %102, %103 : vector<8x32xf32>
    %105 = math.tanh %104 : vector<8x32xf32>
    %106 = arith.mulf %101, %105 : vector<8x32xf32>
    %107 = arith.index_cast %c2_i32 : i32 to index
    %c0_28 = arith.constant 0 : index
    %c0_29 = arith.constant 0 : index
    %108 = vector.load %arg9[%107, %c0_28, %c0_29] : memref<8x8x32xf32, #tpu.memory_space<vmem>>, vector<1x8x32xf32>
    %109 = vector.shape_cast %108 : vector<1x8x32xf32> to vector<8x32xf32>
    %110 = vector.shape_cast %106 : vector<8x32xf32> to vector<1x8x32xf32>
    tpu.vector_store %arg9[%107, %c0_28, %c0_29], %110 {strides = array<i32>} : memref<8x8x32xf32, #tpu.memory_space<vmem>>, vector<1x8x32xf32>,
    %c3_i32 = arith.constant 3 : i32
    %111 = arith.index_cast %c3_i32 : i32 to index
    %c0_30 = arith.constant 0 : index
    %c0_31 = arith.constant 0 : index
    %112 = vector.load %arg2[%111, %c0_30, %c0_31] : memref<8x8x128xf32, #tpu.memory_space<vmem>>, vector<1x8x128xf32>
    %113 = vector.shape_cast %112 : vector<1x8x128xf32> to vector<8x128xf32>
    %114 = arith.truncf %106 : vector<8x32xf32> to vector<8x32xbf16>
    %cst_32 = arith.constant dense<0.000000e+00> : vector<8x128xf32>
    %115 = tpu.matmul %114, %3, %cst_32 {dimension_numbers = #tpu.dot_dimension_numbers<[1], [0], [0], [1], [0, 0, 1, 1], [], []>} : vector<8x32xbf16>, vector<32x128xbf16>, vector<8x128xf32> -> vector<8x128xf32>
    %116 = arith.addf %113, %115 : vector<8x128xf32>
    %117 = vector.extract_strided_slice %116 {offsets = [0, 0], sizes = [8, 32], strides = [1, 1]} : vector<8x128xf32> to vector<8x32xf32>
    %118 = arith.negf %117 : vector<8x32xf32>
    %119 = math.exp %118 : vector<8x32xf32>
    %cst_33 = arith.constant 1.000000e+00 : f32
    %120 = vector.broadcast %cst_33 : f32 to vector<8x32xf32>
    %121 = arith.addf %120, %119 : vector<8x32xf32>
    %122 = arith.divf %120, %121 : vector<8x32xf32>
    %123 = vector.extract_strided_slice %116 {offsets = [0, 32], sizes = [8, 32], strides = [1, 1]} : vector<8x128xf32> to vector<8x32xf32>
    %124 = arith.negf %123 : vector<8x32xf32>
    %125 = math.exp %124 : vector<8x32xf32>
    %cst_34 = arith.constant 1.000000e+00 : f32
    %126 = vector.broadcast %cst_34 : f32 to vector<8x32xf32>
    %127 = arith.addf %126, %125 : vector<8x32xf32>
    %128 = arith.divf %126, %127 : vector<8x32xf32>
    %129 = vector.extract_strided_slice %116 {offsets = [0, 64], sizes = [8, 32], strides = [1, 1]} : vector<8x128xf32> to vector<8x32xf32>
    %130 = math.tanh %129 : vector<8x32xf32>
    %131 = vector.extract_strided_slice %116 {offsets = [0, 96], sizes = [8, 32], strides = [1, 1]} : vector<8x128xf32> to vector<8x32xf32>
    %132 = arith.negf %131 : vector<8x32xf32>
    %133 = math.exp %132 : vector<8x32xf32>
    %cst_35 = arith.constant 1.000000e+00 : f32
    %134 = vector.broadcast %cst_35 : f32 to vector<8x32xf32>
    %135 = arith.addf %134, %133 : vector<8x32xf32>
    %136 = arith.divf %134, %135 : vector<8x32xf32>
    %137 = arith.mulf %128, %104 : vector<8x32xf32>
    %138 = arith.mulf %122, %130 : vector<8x32xf32>
    %139 = arith.addf %137, %138 : vector<8x32xf32>
    %140 = math.tanh %139 : vector<8x32xf32>
    %141 = arith.mulf %136, %140 : vector<8x32xf32>
    %142 = arith.index_cast %c3_i32 : i32 to index
    %c0_36 = arith.constant 0 : index
    %c0_37 = arith.constant 0 : index
    %143 = vector.load %arg9[%142, %c0_36, %c0_37] : memref<8x8x32xf32, #tpu.memory_space<vmem>>, vector<1x8x32xf32>
    %144 = vector.shape_cast %143 : vector<1x8x32xf32> to vector<8x32xf32>
    %145 = vector.shape_cast %141 : vector<8x32xf32> to vector<1x8x32xf32>
    tpu.vector_store %arg9[%142, %c0_36, %c0_37], %145 {strides = array<i32>} : memref<8x8x32xf32, #tpu.memory_space<vmem>>, vector<1x8x32xf32>,
    %c4_i32 = arith.constant 4 : i32
    %146 = arith.index_cast %c4_i32 : i32 to index
    %c0_38 = arith.constant 0 : index
    %c0_39 = arith.constant 0 : index
    %147 = vector.load %arg2[%146, %c0_38, %c0_39] : memref<8x8x128xf32, #tpu.memory_space<vmem>>, vector<1x8x128xf32>
    %148 = vector.shape_cast %147 : vector<1x8x128xf32> to vector<8x128xf32>
    %149 = arith.truncf %141 : vector<8x32xf32> to vector<8x32xbf16>
    %cst_40 = arith.constant dense<0.000000e+00> : vector<8x128xf32>
    %150 = tpu.matmul %149, %3, %cst_40 {dimension_numbers = #tpu.dot_dimension_numbers<[1], [0], [0], [1], [0, 0, 1, 1], [], []>} : vector<8x32xbf16>, vector<32x128xbf16>, vector<8x128xf32> -> vector<8x128xf32>
    %151 = arith.addf %148, %150 : vector<8x128xf32>
    %152 = vector.extract_strided_slice %151 {offsets = [0, 0], sizes = [8, 32], strides = [1, 1]} : vector<8x128xf32> to vector<8x32xf32>
    %153 = arith.negf %152 : vector<8x32xf32>
    %154 = math.exp %153 : vector<8x32xf32>
    %cst_41 = arith.constant 1.000000e+00 : f32
    %155 = vector.broadcast %cst_41 : f32 to vector<8x32xf32>
    %156 = arith.addf %155, %154 : vector<8x32xf32>
    %157 = arith.divf %155, %156 : vector<8x32xf32>
    %158 = vector.extract_strided_slice %151 {offsets = [0, 32], sizes = [8, 32], strides = [1, 1]} : vector<8x128xf32> to vector<8x32xf32>
    %159 = arith.negf %158 : vector<8x32xf32>
    %160 = math.exp %159 : vector<8x32xf32>
    %cst_42 = arith.constant 1.000000e+00 : f32
    %161 = vector.broadcast %cst_42 : f32 to vector<8x32xf32>
    %162 = arith.addf %161, %160 : vector<8x32xf32>
    %163 = arith.divf %161, %162 : vector<8x32xf32>
    %164 = vector.extract_strided_slice %151 {offsets = [0, 64], sizes = [8, 32], strides = [1, 1]} : vector<8x128xf32> to vector<8x32xf32>
    %165 = math.tanh %164 : vector<8x32xf32>
    %166 = vector.extract_strided_slice %151 {offsets = [0, 96], sizes = [8, 32], strides = [1, 1]} : vector<8x128xf32> to vector<8x32xf32>
    %167 = arith.negf %166 : vector<8x32xf32>
    %168 = math.exp %167 : vector<8x32xf32>
    %cst_43 = arith.constant 1.000000e+00 : f32
    %169 = vector.broadcast %cst_43 : f32 to vector<8x32xf32>
    %170 = arith.addf %169, %168 : vector<8x32xf32>
    %171 = arith.divf %169, %170 : vector<8x32xf32>
    %172 = arith.mulf %163, %139 : vector<8x32xf32>
    %173 = arith.mulf %157, %165 : vector<8x32xf32>
    %174 = arith.addf %172, %173 : vector<8x32xf32>
    %175 = math.tanh %174 : vector<8x32xf32>
    %176 = arith.mulf %171, %175 : vector<8x32xf32>
    %177 = arith.index_cast %c4_i32 : i32 to index
    %c0_44 = arith.constant 0 : index
    %c0_45 = arith.constant 0 : index
    %178 = vector.load %arg9[%177, %c0_44, %c0_45] : memref<8x8x32xf32, #tpu.memory_space<vmem>>, vector<1x8x32xf32>
    %179 = vector.shape_cast %178 : vector<1x8x32xf32> to vector<8x32xf32>
    %180 = vector.shape_cast %176 : vector<8x32xf32> to vector<1x8x32xf32>
    tpu.vector_store %arg9[%177, %c0_44, %c0_45], %180 {strides = array<i32>} : memref<8x8x32xf32, #tpu.memory_space<vmem>>, vector<1x8x32xf32>,
    %c5_i32 = arith.constant 5 : i32
    %181 = arith.index_cast %c5_i32 : i32 to index
    %c0_46 = arith.constant 0 : index
    %c0_47 = arith.constant 0 : index
    %182 = vector.load %arg2[%181, %c0_46, %c0_47] : memref<8x8x128xf32, #tpu.memory_space<vmem>>, vector<1x8x128xf32>
    %183 = vector.shape_cast %182 : vector<1x8x128xf32> to vector<8x128xf32>
    %184 = arith.truncf %176 : vector<8x32xf32> to vector<8x32xbf16>
    %cst_48 = arith.constant dense<0.000000e+00> : vector<8x128xf32>
    %185 = tpu.matmul %184, %3, %cst_48 {dimension_numbers = #tpu.dot_dimension_numbers<[1], [0], [0], [1], [0, 0, 1, 1], [], []>} : vector<8x32xbf16>, vector<32x128xbf16>, vector<8x128xf32> -> vector<8x128xf32>
    %186 = arith.addf %183, %185 : vector<8x128xf32>
    %187 = vector.extract_strided_slice %186 {offsets = [0, 0], sizes = [8, 32], strides = [1, 1]} : vector<8x128xf32> to vector<8x32xf32>
    %188 = arith.negf %187 : vector<8x32xf32>
    %189 = math.exp %188 : vector<8x32xf32>
    %cst_49 = arith.constant 1.000000e+00 : f32
    %190 = vector.broadcast %cst_49 : f32 to vector<8x32xf32>
    %191 = arith.addf %190, %189 : vector<8x32xf32>
    %192 = arith.divf %190, %191 : vector<8x32xf32>
    %193 = vector.extract_strided_slice %186 {offsets = [0, 32], sizes = [8, 32], strides = [1, 1]} : vector<8x128xf32> to vector<8x32xf32>
    %194 = arith.negf %193 : vector<8x32xf32>
    %195 = math.exp %194 : vector<8x32xf32>
    %cst_50 = arith.constant 1.000000e+00 : f32
    %196 = vector.broadcast %cst_50 : f32 to vector<8x32xf32>
    %197 = arith.addf %196, %195 : vector<8x32xf32>
    %198 = arith.divf %196, %197 : vector<8x32xf32>
    %199 = vector.extract_strided_slice %186 {offsets = [0, 64], sizes = [8, 32], strides = [1, 1]} : vector<8x128xf32> to vector<8x32xf32>
    %200 = math.tanh %199 : vector<8x32xf32>
    %201 = vector.extract_strided_slice %186 {offsets = [0, 96], sizes = [8, 32], strides = [1, 1]} : vector<8x128xf32> to vector<8x32xf32>
    %202 = arith.negf %201 : vector<8x32xf32>
    %203 = math.exp %202 : vector<8x32xf32>
    %cst_51 = arith.constant 1.000000e+00 : f32
    %204 = vector.broadcast %cst_51 : f32 to vector<8x32xf32>
    %205 = arith.addf %204, %203 : vector<8x32xf32>
    %206 = arith.divf %204, %205 : vector<8x32xf32>
    %207 = arith.mulf %198, %174 : vector<8x32xf32>
    %208 = arith.mulf %192, %200 : vector<8x32xf32>
    %209 = arith.addf %207, %208 : vector<8x32xf32>
    %210 = math.tanh %209 : vector<8x32xf32>
    %211 = arith.mulf %206, %210 : vector<8x32xf32>
    %212 = arith.index_cast %c5_i32 : i32 to index
    %c0_52 = arith.constant 0 : index
    %c0_53 = arith.constant 0 : index
    %213 = vector.load %arg9[%212, %c0_52, %c0_53] : memref<8x8x32xf32, #tpu.memory_space<vmem>>, vector<1x8x32xf32>
    %214 = vector.shape_cast %213 : vector<1x8x32xf32> to vector<8x32xf32>
    %215 = vector.shape_cast %211 : vector<8x32xf32> to vector<1x8x32xf32>
    tpu.vector_store %arg9[%212, %c0_52, %c0_53], %215 {strides = array<i32>} : memref<8x8x32xf32, #tpu.memory_space<vmem>>, vector<1x8x32xf32>,
    %c6_i32 = arith.constant 6 : i32
    %216 = arith.index_cast %c6_i32 : i32 to index
    %c0_54 = arith.constant 0 : index
    %c0_55 = arith.constant 0 : index
    %217 = vector.load %arg2[%216, %c0_54, %c0_55] : memref<8x8x128xf32, #tpu.memory_space<vmem>>, vector<1x8x128xf32>
    %218 = vector.shape_cast %217 : vector<1x8x128xf32> to vector<8x128xf32>
    %219 = arith.truncf %211 : vector<8x32xf32> to vector<8x32xbf16>
    %cst_56 = arith.constant dense<0.000000e+00> : vector<8x128xf32>
    %220 = tpu.matmul %219, %3, %cst_56 {dimension_numbers = #tpu.dot_dimension_numbers<[1], [0], [0], [1], [0, 0, 1, 1], [], []>} : vector<8x32xbf16>, vector<32x128xbf16>, vector<8x128xf32> -> vector<8x128xf32>
    %221 = arith.addf %218, %220 : vector<8x128xf32>
    %222 = vector.extract_strided_slice %221 {offsets = [0, 0], sizes = [8, 32], strides = [1, 1]} : vector<8x128xf32> to vector<8x32xf32>
    %223 = arith.negf %222 : vector<8x32xf32>
    %224 = math.exp %223 : vector<8x32xf32>
    %cst_57 = arith.constant 1.000000e+00 : f32
    %225 = vector.broadcast %cst_57 : f32 to vector<8x32xf32>
    %226 = arith.addf %225, %224 : vector<8x32xf32>
    %227 = arith.divf %225, %226 : vector<8x32xf32>
    %228 = vector.extract_strided_slice %221 {offsets = [0, 32], sizes = [8, 32], strides = [1, 1]} : vector<8x128xf32> to vector<8x32xf32>
    %229 = arith.negf %228 : vector<8x32xf32>
    %230 = math.exp %229 : vector<8x32xf32>
    %cst_58 = arith.constant 1.000000e+00 : f32
    %231 = vector.broadcast %cst_58 : f32 to vector<8x32xf32>
    %232 = arith.addf %231, %230 : vector<8x32xf32>
    %233 = arith.divf %231, %232 : vector<8x32xf32>
    %234 = vector.extract_strided_slice %221 {offsets = [0, 64], sizes = [8, 32], strides = [1, 1]} : vector<8x128xf32> to vector<8x32xf32>
    %235 = math.tanh %234 : vector<8x32xf32>
    %236 = vector.extract_strided_slice %221 {offsets = [0, 96], sizes = [8, 32], strides = [1, 1]} : vector<8x128xf32> to vector<8x32xf32>
    %237 = arith.negf %236 : vector<8x32xf32>
    %238 = math.exp %237 : vector<8x32xf32>
    %cst_59 = arith.constant 1.000000e+00 : f32
    %239 = vector.broadcast %cst_59 : f32 to vector<8x32xf32>
    %240 = arith.addf %239, %238 : vector<8x32xf32>
    %241 = arith.divf %239, %240 : vector<8x32xf32>
    %242 = arith.mulf %233, %209 : vector<8x32xf32>
    %243 = arith.mulf %227, %235 : vector<8x32xf32>
    %244 = arith.addf %242, %243 : vector<8x32xf32>
    %245 = math.tanh %244 : vector<8x32xf32>
    %246 = arith.mulf %241, %245 : vector<8x32xf32>
    %247 = arith.index_cast %c6_i32 : i32 to index
    %c0_60 = arith.constant 0 : index
    %c0_61 = arith.constant 0 : index
    %248 = vector.load %arg9[%247, %c0_60, %c0_61] : memref<8x8x32xf32, #tpu.memory_space<vmem>>, vector<1x8x32xf32>
    %249 = vector.shape_cast %248 : vector<1x8x32xf32> to vector<8x32xf32>
    %250 = vector.shape_cast %246 : vector<8x32xf32> to vector<1x8x32xf32>
    tpu.vector_store %arg9[%247, %c0_60, %c0_61], %250 {strides = array<i32>} : memref<8x8x32xf32, #tpu.memory_space<vmem>>, vector<1x8x32xf32>,
    %c7_i32 = arith.constant 7 : i32
    %251 = arith.index_cast %c7_i32 : i32 to index
    %c0_62 = arith.constant 0 : index
    %c0_63 = arith.constant 0 : index
    %252 = vector.load %arg2[%251, %c0_62, %c0_63] : memref<8x8x128xf32, #tpu.memory_space<vmem>>, vector<1x8x128xf32>
    %253 = vector.shape_cast %252 : vector<1x8x128xf32> to vector<8x128xf32>
    %254 = arith.truncf %246 : vector<8x32xf32> to vector<8x32xbf16>
    %cst_64 = arith.constant dense<0.000000e+00> : vector<8x128xf32>
    %255 = tpu.matmul %254, %3, %cst_64 {dimension_numbers = #tpu.dot_dimension_numbers<[1], [0], [0], [1], [0, 0, 1, 1], [], []>} : vector<8x32xbf16>, vector<32x128xbf16>, vector<8x128xf32> -> vector<8x128xf32>
    %256 = arith.addf %253, %255 : vector<8x128xf32>
    %257 = vector.extract_strided_slice %256 {offsets = [0, 0], sizes = [8, 32], strides = [1, 1]} : vector<8x128xf32> to vector<8x32xf32>
    %258 = arith.negf %257 : vector<8x32xf32>
    %259 = math.exp %258 : vector<8x32xf32>
    %cst_65 = arith.constant 1.000000e+00 : f32
    %260 = vector.broadcast %cst_65 : f32 to vector<8x32xf32>
    %261 = arith.addf %260, %259 : vector<8x32xf32>
    %262 = arith.divf %260, %261 : vector<8x32xf32>
    %263 = vector.extract_strided_slice %256 {offsets = [0, 32], sizes = [8, 32], strides = [1, 1]} : vector<8x128xf32> to vector<8x32xf32>
    %264 = arith.negf %263 : vector<8x32xf32>
    %265 = math.exp %264 : vector<8x32xf32>
    %cst_66 = arith.constant 1.000000e+00 : f32
    %266 = vector.broadcast %cst_66 : f32 to vector<8x32xf32>
    %267 = arith.addf %266, %265 : vector<8x32xf32>
    %268 = arith.divf %266, %267 : vector<8x32xf32>
    %269 = vector.extract_strided_slice %256 {offsets = [0, 64], sizes = [8, 32], strides = [1, 1]} : vector<8x128xf32> to vector<8x32xf32>
    %270 = math.tanh %269 : vector<8x32xf32>
    %271 = vector.extract_strided_slice %256 {offsets = [0, 96], sizes = [8, 32], strides = [1, 1]} : vector<8x128xf32> to vector<8x32xf32>
    %272 = arith.negf %271 : vector<8x32xf32>
    %273 = math.exp %272 : vector<8x32xf32>
    %cst_67 = arith.constant 1.000000e+00 : f32
    %274 = vector.broadcast %cst_67 : f32 to vector<8x32xf32>
    %275 = arith.addf %274, %273 : vector<8x32xf32>
    %276 = arith.divf %274, %275 : vector<8x32xf32>
    %277 = arith.mulf %268, %244 : vector<8x32xf32>
    %278 = arith.mulf %262, %270 : vector<8x32xf32>
    %279 = arith.addf %277, %278 : vector<8x32xf32>
    %280 = math.tanh %279 : vector<8x32xf32>
    %281 = arith.mulf %276, %280 : vector<8x32xf32>
    %282 = arith.index_cast %c7_i32 : i32 to index
    %c0_68 = arith.constant 0 : index
    %c0_69 = arith.constant 0 : index
    %283 = vector.load %arg9[%282, %c0_68, %c0_69] : memref<8x8x32xf32, #tpu.memory_space<vmem>>, vector<1x8x32xf32>
    %284 = vector.shape_cast %283 : vector<1x8x32xf32> to vector<8x32xf32>
    %285 = vector.shape_cast %281 : vector<8x32xf32> to vector<1x8x32xf32>
    tpu.vector_store %arg9[%282, %c0_68, %c0_69], %285 {strides = array<i32>} : memref<8x8x32xf32, #tpu.memory_space<vmem>>, vector<1x8x32xf32>,
    %c8_i32 = arith.constant 8 : i32
    %c0_70 = arith.constant 0 : index
    %c0_71 = arith.constant 0 : index
    %286 = vector.load %arg7[%c0_70, %c0_71] : memref<8x32xf32, #tpu.memory_space<vmem>>, vector<8x32xf32>
    tpu.vector_store %arg7[%c0_70, %c0_71], %281 {strides = array<i32>} : memref<8x32xf32, #tpu.memory_space<vmem>>, vector<8x32xf32>,
    %c0_72 = arith.constant 0 : index
    %c0_73 = arith.constant 0 : index
    %287 = vector.load %arg8[%c0_72, %c0_73] : memref<8x32xf32, #tpu.memory_space<vmem>>, vector<8x32xf32>
    tpu.vector_store %arg8[%c0_72, %c0_73], %279 {strides = array<i32>} : memref<8x32xf32, #tpu.memory_space<vmem>>, vector<8x32xf32>,
    %c0_74 = arith.constant 0 : index
    %c0_75 = arith.constant 0 : index
    %c0_76 = arith.constant 0 : index
    %288 = vector.load %arg9[%c0_74, %c0_75, %c0_76] : memref<8x8x32xf32, #tpu.memory_space<vmem>>, vector<8x8x32xf32>
    %cst_77 = arith.constant dense<0.000000e+00> : vector<8x8xf32>
    %289 = vector.multi_reduction <add>, %288, %cst_77 [2] : vector<8x8x32xf32> to vector<8x8xf32>
    %290 = vector.shape_cast %289 : vector<8x8xf32> to vector<8x8x1xf32>
    %cst_78 = arith.constant 3.200000e+01 : f32
    %291 = vector.broadcast %cst_78 : f32 to vector<8x8x1xf32>
    %292 = arith.divf %290, %291 : vector<8x8x1xf32>
    %293 = vector.broadcast %292 : vector<8x8x1xf32> to vector<8x8x32xf32>
    %294 = arith.subf %288, %293 : vector<8x8x32xf32>
    %295 = arith.mulf %294, %294 : vector<8x8x32xf32>
    %cst_79 = arith.constant dense<0.000000e+00> : vector<8x8xf32>
    %296 = vector.multi_reduction <add>, %295, %cst_79 [2] : vector<8x8x32xf32> to vector<8x8xf32>
    %297 = vector.shape_cast %296 : vector<8x8xf32> to vector<8x8x1xf32>
    %cst_80 = arith.constant 3.200000e+01 : f32
    %298 = vector.broadcast %cst_80 : f32 to vector<8x8x1xf32>
    %299 = arith.divf %297, %298 : vector<8x8x1xf32>
    %cst_81 = arith.constant 9.99999974E-6 : f32
    %300 = vector.broadcast %cst_81 : f32 to vector<8x8x1xf32>
    %301 = arith.addf %299, %300 : vector<8x8x1xf32>
    %302 = math.rsqrt %301 : vector<8x8x1xf32>
    %303 = vector.broadcast %302 : vector<8x8x1xf32> to vector<8x8x32xf32>
    %304 = arith.mulf %294, %303 : vector<8x8x32xf32>
    %c0_82 = arith.constant 0 : index
    %c0_83 = arith.constant 0 : index
    %305 = vector.load %arg4[%c0_82, %c0_83] : memref<1x32xf32, #tpu.memory_space<vmem>>, vector<1x32xf32>
    %306 = vector.shape_cast %305 : vector<1x32xf32> to vector<1x1x32xf32>
    %307 = vector.broadcast %306 : vector<1x1x32xf32> to vector<8x8x32xf32>
    %308 = arith.mulf %304, %307 : vector<8x8x32xf32>
    %c0_84 = arith.constant 0 : index
    %c0_85 = arith.constant 0 : index
    %309 = vector.load %arg5[%c0_84, %c0_85] : memref<1x32xf32, #tpu.memory_space<vmem>>, vector<1x32xf32>
    %310 = vector.shape_cast %309 : vector<1x32xf32> to vector<1x1x32xf32>
    %311 = vector.broadcast %310 : vector<1x1x32xf32> to vector<8x8x32xf32>
    %312 = arith.addf %308, %311 : vector<8x8x32xf32>
    %313 = arith.truncf %312 : vector<8x8x32xf32> to vector<8x8x32xbf16>
    %c0_86 = arith.constant 0 : index
    %c0_87 = arith.constant 0 : index
    %c0_88 = arith.constant 0 : index
    %314 = vector.load %arg6[%c0_86, %c0_87, %c0_88] : memref<8x8x32xbf16, #tpu.memory_space<vmem>>, vector<8x8x32xbf16>
    tpu.vector_store %arg6[%c0_86, %c0_87, %c0_88], %313 {strides = array<i32>} : memref<8x8x32xbf16, #tpu.memory_space<vmem>>, vector<8x8x32xbf16>,
    return
  }
  func.func @transform_0(%arg0: i32, %arg1: i32) -> (i32, i32, i32) {
    %c0_i32 = arith.constant 0 : i32
    %c0_i32_0 = arith.constant 0 : i32
    return %arg1, %arg0, %c0_i32 : i32, i32, i32
  }
  func.func @transform_1(%arg0: i32, %arg1: i32) -> (i32, i32) {
    %c0_i32 = arith.constant 0 : i32
    %c0_i32_0 = arith.constant 0 : i32
    %c0_i32_1 = arith.constant 0 : i32
    return %c0_i32, %c0_i32_0 : i32, i32
  }
  func.func @transform_2(%arg0: i32, %arg1: i32) -> (i32, i32) {
    %c0_i32 = arith.constant 0 : i32
    %c0_i32_0 = arith.constant 0 : i32
    %c0_i32_1 = arith.constant 0 : i32
    return %c0_i32, %c0_i32_0 : i32, i32
  }
  func.func @transform_3(%arg0: i32, %arg1: i32) -> (i32, i32) {
    %c0_i32 = arith.constant 0 : i32
    %c0_i32_0 = arith.constant 0 : i32
    %c0_i32_1 = arith.constant 0 : i32
    return %c0_i32, %c0_i32_0 : i32, i32
  }
  func.func @transform_4(%arg0: i32, %arg1: i32) -> (i32, i32, i32) {
    %c0_i32 = arith.constant 0 : i32
    %c0_i32_0 = arith.constant 0 : i32
    return %arg1, %arg0, %c0_i32 : i32, i32, i32
  }
}

module attributes {stable_mosaic.version = 11 : i64} {
  func.func @_lstm_layer_kernel(%arg0: i32, %arg1: i32, %arg2: memref<8x8x32xbf16, #tpu.memory_space<vmem>>, %arg3: memref<32x128xbf16, #tpu.memory_space<vmem>>, %arg4: memref<32x128xbf16, #tpu.memory_space<vmem>>, %arg5: memref<1x128xf32, #tpu.memory_space<vmem>>, %arg6: memref<8x32xf32, #tpu.memory_space<vmem>>, %arg7: memref<8x8x128xf32, #tpu.memory_space<vmem>>, %arg8: memref<8x32xf32, #tpu.memory_space<vmem>>, %arg9: memref<8x32xf32, #tpu.memory_space<vmem>>) attributes {dimension_semantics = [#tpu.dimension_semantics<parallel>, #tpu.dimension_semantics<arbitrary>], iteration_bounds = array<i64: 1, 1>, scalar_prefetch = 0 : i64, scratch_operands = 3 : i64, tpu.core_type = #tpu.core_type<tc>, window_params = [{transform_indices = @transform_0, window_bounds = array<i64: 8, 8, 32>}, {pipeline_mode = #tpu.pipeline_mode<synchronous>, transform_indices = @transform_1, window_bounds = array<i64: 32, 128>}, {pipeline_mode = #tpu.pipeline_mode<synchronous>, transform_indices = @transform_2, window_bounds = array<i64: 32, 128>}, {pipeline_mode = #tpu.pipeline_mode<synchronous>, transform_indices = @transform_3, window_bounds = array<i64: 1, 128>}, {transform_indices = @transform_4, window_bounds = array<i64: 8, 32>}]} {
    %c0_i32 = arith.constant 0 : i32
    %0 = arith.cmpi eq, %arg1, %c0_i32 : i32
    %1 = arith.extui %0 : i1 to i32
    %c0_i32_0 = arith.constant 0 : i32
    %2 = arith.cmpi ne, %1, %c0_i32_0 : i32
    scf.if %2 {
      %cst_71 = arith.constant 0.000000e+00 : f32
      %267 = vector.broadcast %cst_71 : f32 to vector<8x32xf32>
      %c0_72 = arith.constant 0 : index
      %c0_73 = arith.constant 0 : index
      %268 = vector.load %arg8[%c0_72, %c0_73] : memref<8x32xf32, #tpu.memory_space<vmem>>, vector<8x32xf32>
      tpu.vector_store %arg8[%c0_72, %c0_73], %267 {strides = array<i32>} : memref<8x32xf32, #tpu.memory_space<vmem>>, vector<8x32xf32>,
      %cst_74 = arith.constant 0.000000e+00 : f32
      %269 = vector.broadcast %cst_74 : f32 to vector<8x32xf32>
      %c0_75 = arith.constant 0 : index
      %c0_76 = arith.constant 0 : index
      %270 = vector.load %arg9[%c0_75, %c0_76] : memref<8x32xf32, #tpu.memory_space<vmem>>, vector<8x32xf32>
      tpu.vector_store %arg9[%c0_75, %c0_76], %269 {strides = array<i32>} : memref<8x32xf32, #tpu.memory_space<vmem>>, vector<8x32xf32>,
    } else {
    }
    %c0 = arith.constant 0 : index
    %c0_1 = arith.constant 0 : index
    %c0_2 = arith.constant 0 : index
    %3 = vector.load %arg2[%c0, %c0_1, %c0_2] : memref<8x8x32xbf16, #tpu.memory_space<vmem>>, vector<8x8x32xbf16>
    %c0_3 = arith.constant 0 : index
    %c0_4 = arith.constant 0 : index
    %4 = vector.load %arg3[%c0_3, %c0_4] : memref<32x128xbf16, #tpu.memory_space<vmem>>, vector<32x128xbf16>
    %cst = arith.constant dense<0.000000e+00> : vector<8x8x128xf32>
    %5 = tpu.matmul %3, %4, %cst {dimension_numbers = #tpu.dot_dimension_numbers<[2], [0], [0, 1], [1], [0, 0, 0, 1, 1, 1], [], []>} : vector<8x8x32xbf16>, vector<32x128xbf16>, vector<8x8x128xf32> -> vector<8x8x128xf32>
    %c0_5 = arith.constant 0 : index
    %c0_6 = arith.constant 0 : index
    %6 = vector.load %arg5[%c0_5, %c0_6] : memref<1x128xf32, #tpu.memory_space<vmem>>, vector<1x128xf32>
    %7 = vector.shape_cast %6 : vector<1x128xf32> to vector<1x1x128xf32>
    %8 = vector.broadcast %7 : vector<1x1x128xf32> to vector<8x8x128xf32>
    %9 = arith.addf %5, %8 : vector<8x8x128xf32>
    %c0_7 = arith.constant 0 : index
    %c0_8 = arith.constant 0 : index
    %c0_9 = arith.constant 0 : index
    %10 = vector.load %arg7[%c0_7, %c0_8, %c0_9] : memref<8x8x128xf32, #tpu.memory_space<vmem>>, vector<8x8x128xf32>
    tpu.vector_store %arg7[%c0_7, %c0_8, %c0_9], %9 {strides = array<i32>} : memref<8x8x128xf32, #tpu.memory_space<vmem>>, vector<8x8x128xf32>,
    %c0_10 = arith.constant 0 : index
    %c0_11 = arith.constant 0 : index
    %11 = vector.load %arg4[%c0_10, %c0_11] : memref<32x128xbf16, #tpu.memory_space<vmem>>, vector<32x128xbf16>
    %c0_12 = arith.constant 0 : index
    %c0_13 = arith.constant 0 : index
    %12 = vector.load %arg8[%c0_12, %c0_13] : memref<8x32xf32, #tpu.memory_space<vmem>>, vector<8x32xf32>
    %c0_14 = arith.constant 0 : index
    %c0_15 = arith.constant 0 : index
    %13 = vector.load %arg9[%c0_14, %c0_15] : memref<8x32xf32, #tpu.memory_space<vmem>>, vector<8x32xf32>
    %c0_i32_16 = arith.constant 0 : i32
    %14 = arith.index_cast %c0_i32_16 : i32 to index
    %c0_17 = arith.constant 0 : index
    %c0_18 = arith.constant 0 : index
    %15 = vector.load %arg7[%14, %c0_17, %c0_18] : memref<8x8x128xf32, #tpu.memory_space<vmem>>, vector<1x8x128xf32>
    %16 = vector.shape_cast %15 : vector<1x8x128xf32> to vector<8x128xf32>
    %17 = arith.truncf %12 : vector<8x32xf32> to vector<8x32xbf16>
    %cst_19 = arith.constant dense<0.000000e+00> : vector<8x128xf32>
    %18 = tpu.matmul %17, %11, %cst_19 {dimension_numbers = #tpu.dot_dimension_numbers<[1], [0], [0], [1], [0, 0, 1, 1], [], []>} : vector<8x32xbf16>, vector<32x128xbf16>, vector<8x128xf32> -> vector<8x128xf32>
    %19 = arith.addf %16, %18 : vector<8x128xf32>
    %20 = vector.extract_strided_slice %19 {offsets = [0, 0], sizes = [8, 32], strides = [1, 1]} : vector<8x128xf32> to vector<8x32xf32>
    %21 = arith.negf %20 : vector<8x32xf32>
    %22 = math.exp %21 : vector<8x32xf32>
    %cst_20 = arith.constant 1.000000e+00 : f32
    %23 = vector.broadcast %cst_20 : f32 to vector<8x32xf32>
    %24 = arith.addf %23, %22 : vector<8x32xf32>
    %25 = arith.divf %23, %24 : vector<8x32xf32>
    %26 = vector.extract_strided_slice %19 {offsets = [0, 32], sizes = [8, 32], strides = [1, 1]} : vector<8x128xf32> to vector<8x32xf32>
    %27 = arith.negf %26 : vector<8x32xf32>
    %28 = math.exp %27 : vector<8x32xf32>
    %cst_21 = arith.constant 1.000000e+00 : f32
    %29 = vector.broadcast %cst_21 : f32 to vector<8x32xf32>
    %30 = arith.addf %29, %28 : vector<8x32xf32>
    %31 = arith.divf %29, %30 : vector<8x32xf32>
    %32 = vector.extract_strided_slice %19 {offsets = [0, 64], sizes = [8, 32], strides = [1, 1]} : vector<8x128xf32> to vector<8x32xf32>
    %33 = math.tanh %32 : vector<8x32xf32>
    %34 = vector.extract_strided_slice %19 {offsets = [0, 96], sizes = [8, 32], strides = [1, 1]} : vector<8x128xf32> to vector<8x32xf32>
    %35 = arith.negf %34 : vector<8x32xf32>
    %36 = math.exp %35 : vector<8x32xf32>
    %cst_22 = arith.constant 1.000000e+00 : f32
    %37 = vector.broadcast %cst_22 : f32 to vector<8x32xf32>
    %38 = arith.addf %37, %36 : vector<8x32xf32>
    %39 = arith.divf %37, %38 : vector<8x32xf32>
    %40 = arith.mulf %31, %13 : vector<8x32xf32>
    %41 = arith.mulf %25, %33 : vector<8x32xf32>
    %42 = arith.addf %40, %41 : vector<8x32xf32>
    %43 = math.tanh %42 : vector<8x32xf32>
    %44 = arith.mulf %39, %43 : vector<8x32xf32>
    %c1_i32 = arith.constant 1 : i32
    %45 = arith.index_cast %c1_i32 : i32 to index
    %c0_23 = arith.constant 0 : index
    %c0_24 = arith.constant 0 : index
    %46 = vector.load %arg7[%45, %c0_23, %c0_24] : memref<8x8x128xf32, #tpu.memory_space<vmem>>, vector<1x8x128xf32>
    %47 = vector.shape_cast %46 : vector<1x8x128xf32> to vector<8x128xf32>
    %48 = arith.truncf %44 : vector<8x32xf32> to vector<8x32xbf16>
    %cst_25 = arith.constant dense<0.000000e+00> : vector<8x128xf32>
    %49 = tpu.matmul %48, %11, %cst_25 {dimension_numbers = #tpu.dot_dimension_numbers<[1], [0], [0], [1], [0, 0, 1, 1], [], []>} : vector<8x32xbf16>, vector<32x128xbf16>, vector<8x128xf32> -> vector<8x128xf32>
    %50 = arith.addf %47, %49 : vector<8x128xf32>
    %51 = vector.extract_strided_slice %50 {offsets = [0, 0], sizes = [8, 32], strides = [1, 1]} : vector<8x128xf32> to vector<8x32xf32>
    %52 = arith.negf %51 : vector<8x32xf32>
    %53 = math.exp %52 : vector<8x32xf32>
    %cst_26 = arith.constant 1.000000e+00 : f32
    %54 = vector.broadcast %cst_26 : f32 to vector<8x32xf32>
    %55 = arith.addf %54, %53 : vector<8x32xf32>
    %56 = arith.divf %54, %55 : vector<8x32xf32>
    %57 = vector.extract_strided_slice %50 {offsets = [0, 32], sizes = [8, 32], strides = [1, 1]} : vector<8x128xf32> to vector<8x32xf32>
    %58 = arith.negf %57 : vector<8x32xf32>
    %59 = math.exp %58 : vector<8x32xf32>
    %cst_27 = arith.constant 1.000000e+00 : f32
    %60 = vector.broadcast %cst_27 : f32 to vector<8x32xf32>
    %61 = arith.addf %60, %59 : vector<8x32xf32>
    %62 = arith.divf %60, %61 : vector<8x32xf32>
    %63 = vector.extract_strided_slice %50 {offsets = [0, 64], sizes = [8, 32], strides = [1, 1]} : vector<8x128xf32> to vector<8x32xf32>
    %64 = math.tanh %63 : vector<8x32xf32>
    %65 = vector.extract_strided_slice %50 {offsets = [0, 96], sizes = [8, 32], strides = [1, 1]} : vector<8x128xf32> to vector<8x32xf32>
    %66 = arith.negf %65 : vector<8x32xf32>
    %67 = math.exp %66 : vector<8x32xf32>
    %cst_28 = arith.constant 1.000000e+00 : f32
    %68 = vector.broadcast %cst_28 : f32 to vector<8x32xf32>
    %69 = arith.addf %68, %67 : vector<8x32xf32>
    %70 = arith.divf %68, %69 : vector<8x32xf32>
    %71 = arith.mulf %62, %42 : vector<8x32xf32>
    %72 = arith.mulf %56, %64 : vector<8x32xf32>
    %73 = arith.addf %71, %72 : vector<8x32xf32>
    %74 = math.tanh %73 : vector<8x32xf32>
    %75 = arith.mulf %70, %74 : vector<8x32xf32>
    %c2_i32 = arith.constant 2 : i32
    %76 = arith.index_cast %c2_i32 : i32 to index
    %c0_29 = arith.constant 0 : index
    %c0_30 = arith.constant 0 : index
    %77 = vector.load %arg7[%76, %c0_29, %c0_30] : memref<8x8x128xf32, #tpu.memory_space<vmem>>, vector<1x8x128xf32>
    %78 = vector.shape_cast %77 : vector<1x8x128xf32> to vector<8x128xf32>
    %79 = arith.truncf %75 : vector<8x32xf32> to vector<8x32xbf16>
    %cst_31 = arith.constant dense<0.000000e+00> : vector<8x128xf32>
    %80 = tpu.matmul %79, %11, %cst_31 {dimension_numbers = #tpu.dot_dimension_numbers<[1], [0], [0], [1], [0, 0, 1, 1], [], []>} : vector<8x32xbf16>, vector<32x128xbf16>, vector<8x128xf32> -> vector<8x128xf32>
    %81 = arith.addf %78, %80 : vector<8x128xf32>
    %82 = vector.extract_strided_slice %81 {offsets = [0, 0], sizes = [8, 32], strides = [1, 1]} : vector<8x128xf32> to vector<8x32xf32>
    %83 = arith.negf %82 : vector<8x32xf32>
    %84 = math.exp %83 : vector<8x32xf32>
    %cst_32 = arith.constant 1.000000e+00 : f32
    %85 = vector.broadcast %cst_32 : f32 to vector<8x32xf32>
    %86 = arith.addf %85, %84 : vector<8x32xf32>
    %87 = arith.divf %85, %86 : vector<8x32xf32>
    %88 = vector.extract_strided_slice %81 {offsets = [0, 32], sizes = [8, 32], strides = [1, 1]} : vector<8x128xf32> to vector<8x32xf32>
    %89 = arith.negf %88 : vector<8x32xf32>
    %90 = math.exp %89 : vector<8x32xf32>
    %cst_33 = arith.constant 1.000000e+00 : f32
    %91 = vector.broadcast %cst_33 : f32 to vector<8x32xf32>
    %92 = arith.addf %91, %90 : vector<8x32xf32>
    %93 = arith.divf %91, %92 : vector<8x32xf32>
    %94 = vector.extract_strided_slice %81 {offsets = [0, 64], sizes = [8, 32], strides = [1, 1]} : vector<8x128xf32> to vector<8x32xf32>
    %95 = math.tanh %94 : vector<8x32xf32>
    %96 = vector.extract_strided_slice %81 {offsets = [0, 96], sizes = [8, 32], strides = [1, 1]} : vector<8x128xf32> to vector<8x32xf32>
    %97 = arith.negf %96 : vector<8x32xf32>
    %98 = math.exp %97 : vector<8x32xf32>
    %cst_34 = arith.constant 1.000000e+00 : f32
    %99 = vector.broadcast %cst_34 : f32 to vector<8x32xf32>
    %100 = arith.addf %99, %98 : vector<8x32xf32>
    %101 = arith.divf %99, %100 : vector<8x32xf32>
    %102 = arith.mulf %93, %73 : vector<8x32xf32>
    %103 = arith.mulf %87, %95 : vector<8x32xf32>
    %104 = arith.addf %102, %103 : vector<8x32xf32>
    %105 = math.tanh %104 : vector<8x32xf32>
    %106 = arith.mulf %101, %105 : vector<8x32xf32>
    %c3_i32 = arith.constant 3 : i32
    %107 = arith.index_cast %c3_i32 : i32 to index
    %c0_35 = arith.constant 0 : index
    %c0_36 = arith.constant 0 : index
    %108 = vector.load %arg7[%107, %c0_35, %c0_36] : memref<8x8x128xf32, #tpu.memory_space<vmem>>, vector<1x8x128xf32>
    %109 = vector.shape_cast %108 : vector<1x8x128xf32> to vector<8x128xf32>
    %110 = arith.truncf %106 : vector<8x32xf32> to vector<8x32xbf16>
    %cst_37 = arith.constant dense<0.000000e+00> : vector<8x128xf32>
    %111 = tpu.matmul %110, %11, %cst_37 {dimension_numbers = #tpu.dot_dimension_numbers<[1], [0], [0], [1], [0, 0, 1, 1], [], []>} : vector<8x32xbf16>, vector<32x128xbf16>, vector<8x128xf32> -> vector<8x128xf32>
    %112 = arith.addf %109, %111 : vector<8x128xf32>
    %113 = vector.extract_strided_slice %112 {offsets = [0, 0], sizes = [8, 32], strides = [1, 1]} : vector<8x128xf32> to vector<8x32xf32>
    %114 = arith.negf %113 : vector<8x32xf32>
    %115 = math.exp %114 : vector<8x32xf32>
    %cst_38 = arith.constant 1.000000e+00 : f32
    %116 = vector.broadcast %cst_38 : f32 to vector<8x32xf32>
    %117 = arith.addf %116, %115 : vector<8x32xf32>
    %118 = arith.divf %116, %117 : vector<8x32xf32>
    %119 = vector.extract_strided_slice %112 {offsets = [0, 32], sizes = [8, 32], strides = [1, 1]} : vector<8x128xf32> to vector<8x32xf32>
    %120 = arith.negf %119 : vector<8x32xf32>
    %121 = math.exp %120 : vector<8x32xf32>
    %cst_39 = arith.constant 1.000000e+00 : f32
    %122 = vector.broadcast %cst_39 : f32 to vector<8x32xf32>
    %123 = arith.addf %122, %121 : vector<8x32xf32>
    %124 = arith.divf %122, %123 : vector<8x32xf32>
    %125 = vector.extract_strided_slice %112 {offsets = [0, 64], sizes = [8, 32], strides = [1, 1]} : vector<8x128xf32> to vector<8x32xf32>
    %126 = math.tanh %125 : vector<8x32xf32>
    %127 = vector.extract_strided_slice %112 {offsets = [0, 96], sizes = [8, 32], strides = [1, 1]} : vector<8x128xf32> to vector<8x32xf32>
    %128 = arith.negf %127 : vector<8x32xf32>
    %129 = math.exp %128 : vector<8x32xf32>
    %cst_40 = arith.constant 1.000000e+00 : f32
    %130 = vector.broadcast %cst_40 : f32 to vector<8x32xf32>
    %131 = arith.addf %130, %129 : vector<8x32xf32>
    %132 = arith.divf %130, %131 : vector<8x32xf32>
    %133 = arith.mulf %124, %104 : vector<8x32xf32>
    %134 = arith.mulf %118, %126 : vector<8x32xf32>
    %135 = arith.addf %133, %134 : vector<8x32xf32>
    %136 = math.tanh %135 : vector<8x32xf32>
    %137 = arith.mulf %132, %136 : vector<8x32xf32>
    %c4_i32 = arith.constant 4 : i32
    %138 = arith.index_cast %c4_i32 : i32 to index
    %c0_41 = arith.constant 0 : index
    %c0_42 = arith.constant 0 : index
    %139 = vector.load %arg7[%138, %c0_41, %c0_42] : memref<8x8x128xf32, #tpu.memory_space<vmem>>, vector<1x8x128xf32>
    %140 = vector.shape_cast %139 : vector<1x8x128xf32> to vector<8x128xf32>
    %141 = arith.truncf %137 : vector<8x32xf32> to vector<8x32xbf16>
    %cst_43 = arith.constant dense<0.000000e+00> : vector<8x128xf32>
    %142 = tpu.matmul %141, %11, %cst_43 {dimension_numbers = #tpu.dot_dimension_numbers<[1], [0], [0], [1], [0, 0, 1, 1], [], []>} : vector<8x32xbf16>, vector<32x128xbf16>, vector<8x128xf32> -> vector<8x128xf32>
    %143 = arith.addf %140, %142 : vector<8x128xf32>
    %144 = vector.extract_strided_slice %143 {offsets = [0, 0], sizes = [8, 32], strides = [1, 1]} : vector<8x128xf32> to vector<8x32xf32>
    %145 = arith.negf %144 : vector<8x32xf32>
    %146 = math.exp %145 : vector<8x32xf32>
    %cst_44 = arith.constant 1.000000e+00 : f32
    %147 = vector.broadcast %cst_44 : f32 to vector<8x32xf32>
    %148 = arith.addf %147, %146 : vector<8x32xf32>
    %149 = arith.divf %147, %148 : vector<8x32xf32>
    %150 = vector.extract_strided_slice %143 {offsets = [0, 32], sizes = [8, 32], strides = [1, 1]} : vector<8x128xf32> to vector<8x32xf32>
    %151 = arith.negf %150 : vector<8x32xf32>
    %152 = math.exp %151 : vector<8x32xf32>
    %cst_45 = arith.constant 1.000000e+00 : f32
    %153 = vector.broadcast %cst_45 : f32 to vector<8x32xf32>
    %154 = arith.addf %153, %152 : vector<8x32xf32>
    %155 = arith.divf %153, %154 : vector<8x32xf32>
    %156 = vector.extract_strided_slice %143 {offsets = [0, 64], sizes = [8, 32], strides = [1, 1]} : vector<8x128xf32> to vector<8x32xf32>
    %157 = math.tanh %156 : vector<8x32xf32>
    %158 = vector.extract_strided_slice %143 {offsets = [0, 96], sizes = [8, 32], strides = [1, 1]} : vector<8x128xf32> to vector<8x32xf32>
    %159 = arith.negf %158 : vector<8x32xf32>
    %160 = math.exp %159 : vector<8x32xf32>
    %cst_46 = arith.constant 1.000000e+00 : f32
    %161 = vector.broadcast %cst_46 : f32 to vector<8x32xf32>
    %162 = arith.addf %161, %160 : vector<8x32xf32>
    %163 = arith.divf %161, %162 : vector<8x32xf32>
    %164 = arith.mulf %155, %135 : vector<8x32xf32>
    %165 = arith.mulf %149, %157 : vector<8x32xf32>
    %166 = arith.addf %164, %165 : vector<8x32xf32>
    %167 = math.tanh %166 : vector<8x32xf32>
    %168 = arith.mulf %163, %167 : vector<8x32xf32>
    %c5_i32 = arith.constant 5 : i32
    %169 = arith.index_cast %c5_i32 : i32 to index
    %c0_47 = arith.constant 0 : index
    %c0_48 = arith.constant 0 : index
    %170 = vector.load %arg7[%169, %c0_47, %c0_48] : memref<8x8x128xf32, #tpu.memory_space<vmem>>, vector<1x8x128xf32>
    %171 = vector.shape_cast %170 : vector<1x8x128xf32> to vector<8x128xf32>
    %172 = arith.truncf %168 : vector<8x32xf32> to vector<8x32xbf16>
    %cst_49 = arith.constant dense<0.000000e+00> : vector<8x128xf32>
    %173 = tpu.matmul %172, %11, %cst_49 {dimension_numbers = #tpu.dot_dimension_numbers<[1], [0], [0], [1], [0, 0, 1, 1], [], []>} : vector<8x32xbf16>, vector<32x128xbf16>, vector<8x128xf32> -> vector<8x128xf32>
    %174 = arith.addf %171, %173 : vector<8x128xf32>
    %175 = vector.extract_strided_slice %174 {offsets = [0, 0], sizes = [8, 32], strides = [1, 1]} : vector<8x128xf32> to vector<8x32xf32>
    %176 = arith.negf %175 : vector<8x32xf32>
    %177 = math.exp %176 : vector<8x32xf32>
    %cst_50 = arith.constant 1.000000e+00 : f32
    %178 = vector.broadcast %cst_50 : f32 to vector<8x32xf32>
    %179 = arith.addf %178, %177 : vector<8x32xf32>
    %180 = arith.divf %178, %179 : vector<8x32xf32>
    %181 = vector.extract_strided_slice %174 {offsets = [0, 32], sizes = [8, 32], strides = [1, 1]} : vector<8x128xf32> to vector<8x32xf32>
    %182 = arith.negf %181 : vector<8x32xf32>
    %183 = math.exp %182 : vector<8x32xf32>
    %cst_51 = arith.constant 1.000000e+00 : f32
    %184 = vector.broadcast %cst_51 : f32 to vector<8x32xf32>
    %185 = arith.addf %184, %183 : vector<8x32xf32>
    %186 = arith.divf %184, %185 : vector<8x32xf32>
    %187 = vector.extract_strided_slice %174 {offsets = [0, 64], sizes = [8, 32], strides = [1, 1]} : vector<8x128xf32> to vector<8x32xf32>
    %188 = math.tanh %187 : vector<8x32xf32>
    %189 = vector.extract_strided_slice %174 {offsets = [0, 96], sizes = [8, 32], strides = [1, 1]} : vector<8x128xf32> to vector<8x32xf32>
    %190 = arith.negf %189 : vector<8x32xf32>
    %191 = math.exp %190 : vector<8x32xf32>
    %cst_52 = arith.constant 1.000000e+00 : f32
    %192 = vector.broadcast %cst_52 : f32 to vector<8x32xf32>
    %193 = arith.addf %192, %191 : vector<8x32xf32>
    %194 = arith.divf %192, %193 : vector<8x32xf32>
    %195 = arith.mulf %186, %166 : vector<8x32xf32>
    %196 = arith.mulf %180, %188 : vector<8x32xf32>
    %197 = arith.addf %195, %196 : vector<8x32xf32>
    %198 = math.tanh %197 : vector<8x32xf32>
    %199 = arith.mulf %194, %198 : vector<8x32xf32>
    %c6_i32 = arith.constant 6 : i32
    %200 = arith.index_cast %c6_i32 : i32 to index
    %c0_53 = arith.constant 0 : index
    %c0_54 = arith.constant 0 : index
    %201 = vector.load %arg7[%200, %c0_53, %c0_54] : memref<8x8x128xf32, #tpu.memory_space<vmem>>, vector<1x8x128xf32>
    %202 = vector.shape_cast %201 : vector<1x8x128xf32> to vector<8x128xf32>
    %203 = arith.truncf %199 : vector<8x32xf32> to vector<8x32xbf16>
    %cst_55 = arith.constant dense<0.000000e+00> : vector<8x128xf32>
    %204 = tpu.matmul %203, %11, %cst_55 {dimension_numbers = #tpu.dot_dimension_numbers<[1], [0], [0], [1], [0, 0, 1, 1], [], []>} : vector<8x32xbf16>, vector<32x128xbf16>, vector<8x128xf32> -> vector<8x128xf32>
    %205 = arith.addf %202, %204 : vector<8x128xf32>
    %206 = vector.extract_strided_slice %205 {offsets = [0, 0], sizes = [8, 32], strides = [1, 1]} : vector<8x128xf32> to vector<8x32xf32>
    %207 = arith.negf %206 : vector<8x32xf32>
    %208 = math.exp %207 : vector<8x32xf32>
    %cst_56 = arith.constant 1.000000e+00 : f32
    %209 = vector.broadcast %cst_56 : f32 to vector<8x32xf32>
    %210 = arith.addf %209, %208 : vector<8x32xf32>
    %211 = arith.divf %209, %210 : vector<8x32xf32>
    %212 = vector.extract_strided_slice %205 {offsets = [0, 32], sizes = [8, 32], strides = [1, 1]} : vector<8x128xf32> to vector<8x32xf32>
    %213 = arith.negf %212 : vector<8x32xf32>
    %214 = math.exp %213 : vector<8x32xf32>
    %cst_57 = arith.constant 1.000000e+00 : f32
    %215 = vector.broadcast %cst_57 : f32 to vector<8x32xf32>
    %216 = arith.addf %215, %214 : vector<8x32xf32>
    %217 = arith.divf %215, %216 : vector<8x32xf32>
    %218 = vector.extract_strided_slice %205 {offsets = [0, 64], sizes = [8, 32], strides = [1, 1]} : vector<8x128xf32> to vector<8x32xf32>
    %219 = math.tanh %218 : vector<8x32xf32>
    %220 = vector.extract_strided_slice %205 {offsets = [0, 96], sizes = [8, 32], strides = [1, 1]} : vector<8x128xf32> to vector<8x32xf32>
    %221 = arith.negf %220 : vector<8x32xf32>
    %222 = math.exp %221 : vector<8x32xf32>
    %cst_58 = arith.constant 1.000000e+00 : f32
    %223 = vector.broadcast %cst_58 : f32 to vector<8x32xf32>
    %224 = arith.addf %223, %222 : vector<8x32xf32>
    %225 = arith.divf %223, %224 : vector<8x32xf32>
    %226 = arith.mulf %217, %197 : vector<8x32xf32>
    %227 = arith.mulf %211, %219 : vector<8x32xf32>
    %228 = arith.addf %226, %227 : vector<8x32xf32>
    %229 = math.tanh %228 : vector<8x32xf32>
    %230 = arith.mulf %225, %229 : vector<8x32xf32>
    %c7_i32 = arith.constant 7 : i32
    %231 = arith.index_cast %c7_i32 : i32 to index
    %c0_59 = arith.constant 0 : index
    %c0_60 = arith.constant 0 : index
    %232 = vector.load %arg7[%231, %c0_59, %c0_60] : memref<8x8x128xf32, #tpu.memory_space<vmem>>, vector<1x8x128xf32>
    %233 = vector.shape_cast %232 : vector<1x8x128xf32> to vector<8x128xf32>
    %234 = arith.truncf %230 : vector<8x32xf32> to vector<8x32xbf16>
    %cst_61 = arith.constant dense<0.000000e+00> : vector<8x128xf32>
    %235 = tpu.matmul %234, %11, %cst_61 {dimension_numbers = #tpu.dot_dimension_numbers<[1], [0], [0], [1], [0, 0, 1, 1], [], []>} : vector<8x32xbf16>, vector<32x128xbf16>, vector<8x128xf32> -> vector<8x128xf32>
    %236 = arith.addf %233, %235 : vector<8x128xf32>
    %237 = vector.extract_strided_slice %236 {offsets = [0, 0], sizes = [8, 32], strides = [1, 1]} : vector<8x128xf32> to vector<8x32xf32>
    %238 = arith.negf %237 : vector<8x32xf32>
    %239 = math.exp %238 : vector<8x32xf32>
    %cst_62 = arith.constant 1.000000e+00 : f32
    %240 = vector.broadcast %cst_62 : f32 to vector<8x32xf32>
    %241 = arith.addf %240, %239 : vector<8x32xf32>
    %242 = arith.divf %240, %241 : vector<8x32xf32>
    %243 = vector.extract_strided_slice %236 {offsets = [0, 32], sizes = [8, 32], strides = [1, 1]} : vector<8x128xf32> to vector<8x32xf32>
    %244 = arith.negf %243 : vector<8x32xf32>
    %245 = math.exp %244 : vector<8x32xf32>
    %cst_63 = arith.constant 1.000000e+00 : f32
    %246 = vector.broadcast %cst_63 : f32 to vector<8x32xf32>
    %247 = arith.addf %246, %245 : vector<8x32xf32>
    %248 = arith.divf %246, %247 : vector<8x32xf32>
    %249 = vector.extract_strided_slice %236 {offsets = [0, 64], sizes = [8, 32], strides = [1, 1]} : vector<8x128xf32> to vector<8x32xf32>
    %250 = math.tanh %249 : vector<8x32xf32>
    %251 = vector.extract_strided_slice %236 {offsets = [0, 96], sizes = [8, 32], strides = [1, 1]} : vector<8x128xf32> to vector<8x32xf32>
    %252 = arith.negf %251 : vector<8x32xf32>
    %253 = math.exp %252 : vector<8x32xf32>
    %cst_64 = arith.constant 1.000000e+00 : f32
    %254 = vector.broadcast %cst_64 : f32 to vector<8x32xf32>
    %255 = arith.addf %254, %253 : vector<8x32xf32>
    %256 = arith.divf %254, %255 : vector<8x32xf32>
    %257 = arith.mulf %248, %228 : vector<8x32xf32>
    %258 = arith.mulf %242, %250 : vector<8x32xf32>
    %259 = arith.addf %257, %258 : vector<8x32xf32>
    %260 = math.tanh %259 : vector<8x32xf32>
    %261 = arith.mulf %256, %260 : vector<8x32xf32>
    %c8_i32 = arith.constant 8 : i32
    %c0_65 = arith.constant 0 : index
    %c0_66 = arith.constant 0 : index
    %262 = vector.load %arg8[%c0_65, %c0_66] : memref<8x32xf32, #tpu.memory_space<vmem>>, vector<8x32xf32>
    tpu.vector_store %arg8[%c0_65, %c0_66], %261 {strides = array<i32>} : memref<8x32xf32, #tpu.memory_space<vmem>>, vector<8x32xf32>,
    %c0_67 = arith.constant 0 : index
    %c0_68 = arith.constant 0 : index
    %263 = vector.load %arg9[%c0_67, %c0_68] : memref<8x32xf32, #tpu.memory_space<vmem>>, vector<8x32xf32>
    tpu.vector_store %arg9[%c0_67, %c0_68], %259 {strides = array<i32>} : memref<8x32xf32, #tpu.memory_space<vmem>>, vector<8x32xf32>,
    %c0_i32_69 = arith.constant 0 : i32
    %264 = arith.cmpi eq, %arg1, %c0_i32_69 : i32
    %265 = arith.extui %264 : i1 to i32
    %c0_i32_70 = arith.constant 0 : i32
    %266 = arith.cmpi ne, %265, %c0_i32_70 : i32
    scf.if %266 {
      %c0_71 = arith.constant 0 : index
      %c0_72 = arith.constant 0 : index
      %267 = vector.load %arg6[%c0_71, %c0_72] : memref<8x32xf32, #tpu.memory_space<vmem>>, vector<8x32xf32>
      tpu.vector_store %arg6[%c0_71, %c0_72], %261 {strides = array<i32>} : memref<8x32xf32, #tpu.memory_space<vmem>>, vector<8x32xf32>,
    } else {
    }
    return
  }
  func.func @transform_0(%arg0: i32, %arg1: i32) -> (i32, i32, i32) {
    %c0_i32 = arith.constant 0 : i32
    %c0_i32_0 = arith.constant 0 : i32
    return %arg1, %arg0, %c0_i32 : i32, i32, i32
  }
  func.func @transform_1(%arg0: i32, %arg1: i32) -> (i32, i32) {
    %c0_i32 = arith.constant 0 : i32
    %c0_i32_0 = arith.constant 0 : i32
    %c0_i32_1 = arith.constant 0 : i32
    return %c0_i32, %c0_i32_0 : i32, i32
  }
  func.func @transform_2(%arg0: i32, %arg1: i32) -> (i32, i32) {
    %c0_i32 = arith.constant 0 : i32
    %c0_i32_0 = arith.constant 0 : i32
    %c0_i32_1 = arith.constant 0 : i32
    return %c0_i32, %c0_i32_0 : i32, i32
  }
  func.func @transform_3(%arg0: i32, %arg1: i32) -> (i32, i32) {
    %c0_i32 = arith.constant 0 : i32
    %c0_i32_0 = arith.constant 0 : i32
    %c0_i32_1 = arith.constant 0 : i32
    return %c0_i32, %c0_i32_0 : i32, i32
  }
  func.func @transform_4(%arg0: i32, %arg1: i32) -> (i32, i32) {
    %c0_i32 = arith.constant 0 : i32
    %c0_i32_0 = arith.constant 0 : i32
    return %arg0, %c0_i32 : i32, i32
  }
}

</mosaic_0001>

<llo_original>
// kernel: lstm_graph_forward.2
$region0: #{lstm_graph_forward.2}
  #allocation0 [shape = 'u32[]', space=smem, size = 0x4, offset = 0x4, fixed_abs, tag = 'smem constant byte address 0x4 - core index']
  #allocation1 [shape = 'u32[72,128]{1,0:T(1,128)}', space=vmem, size = 0x9000, scoped, tag = 'internal scratch']
  #allocation2 [shape = 'f32[8,32]{1,0:T(8,128)}', space=vmem, size = 0x1000, scoped, tag = 'scratch operand']
  #allocation3 [shape = 'f32[8,32]{1,0:T(8,128)}', space=vmem, size = 0x1000, scoped, tag = 'scratch operand']
  #allocation4 [shape = 'f32[8,8,32]{2,1,0:T(8,128)}', space=vmem, size = 0x8000, scoped, tag = 'scratch operand']
  %s0 = inlined_call_operand.vmem [shape: f32[8,8,128], index: 0, kind: input, shape index: {}]
  %s1 = inlined_call_operand.vmem [shape: bf16[32,128], index: 1, kind: input, shape index: {}]
  %s2 = inlined_call_operand.vmem [shape: f32[1,32], index: 2, kind: input, shape index: {}]
  %s3 = inlined_call_operand.vmem [shape: f32[1,32], index: 3, kind: input, shape index: {}]
  %s4 = inlined_call_operand.vmem [shape: bf16[8,8,32], index: 4, kind: output, shape index: {}]
  %s5 = sld [smem:[#allocation0]]
  $region30: #{lstm_graph_forward.2} parent=0
    _
  %s7 = ssub.s32 1, %s5
  %s8 = scalar_select 0, %s7, %s5
  // Predicated region
  $region2: #{lstm_graph_forward.2} parent=0 // pred_check
    _
  $region3: #{lstm_graph_forward.2} parent=0 // pred_check_branch
    %10 = sbr.rel (0) target = $region5
  $region4: #{lstm_graph_forward.2} parent=0 // pred_region
    _
  $region5: #{lstm_graph_forward.2} parent=0 // pred_fallthru
    _
  // Predicated region
  $region6: #{lstm_graph_forward.2} parent=0 // pred_check
    _
  $region7: #{lstm_graph_forward.2} parent=0 // pred_check_branch
    %12 = sbr.rel (0) target = $region9
  $region8: #{lstm_graph_forward.2} parent=0 // pred_region
    _
  $region9: #{lstm_graph_forward.2} parent=0 // pred_fallthru
    _
  // Predicated region
  $region10: #{lstm_graph_forward.2} parent=0 // pred_check
    _
  $region11: #{lstm_graph_forward.2} parent=0 // pred_check_branch
    %14 = sbr.rel (0) target = $region13
  $region12: #{lstm_graph_forward.2} parent=0 // pred_region
    _
  $region13: #{lstm_graph_forward.2} parent=0 // pred_fallthru
    _
  // Predicated region
  $region14: #{lstm_graph_forward.2} parent=0 // pred_check
    _
  $region15: #{lstm_graph_forward.2} parent=0 // pred_check_branch
    %16 = sbr.rel (0) target = $region17
  $region16: #{lstm_graph_forward.2} parent=0 // pred_region
    _
  $region17: #{lstm_graph_forward.2} parent=0 // pred_fallthru
    _
  %p18 = scmp.eq.s32.totalorder 0, 0
  // Predicated region
  $region18: #{lstm_graph_forward.2} parent=0 // pred_check
    %p19 = pneg %p18
  $region19: #{lstm_graph_forward.2} parent=0 // pred_check_branch
    %21 = sbr.rel (%p19) target = $region21
  $region20: #{lstm_graph_forward.2} parent=0 // pred_region
    %vm22 = vcmask 261120
    %23 = vst.msk [vmem:[#allocation2] sm:$0xff] %vm22, 0.0
    %24 = vst.msk [vmem:[#allocation3] sm:$0xff] %vm22, 0.0
  $region21: #{lstm_graph_forward.2} parent=0 // pred_fallthru
    _
  %v25 = vld [vmem:[%s1] sm:$0xf]
  %v26 = vld [vmem:[%s1 + $0x4] sm:$0xf]
  %v27 = vld [vmem:[%s1 + $0x8] sm:$0xf]
  %v28 = vld [vmem:[%s1 + $0xc] sm:$0xf]
  %v29 = vld [vmem:[#allocation2] sm:$0xff]
  %v30 = vld [vmem:[#allocation3] sm:$0xff]
  %v31 = vld [vmem:[%s0] sm:$0xff]
  %v32 = vpack.c.bf16 %v29, %v29
  %v37 = vunpack.c.l.b16 %v25
  %v38 = vunpack.c.l.b16 %v26
  %v39 = vunpack.c.l.b16 %v27
  %v40 = vunpack.c.l.b16 %v28
  %v41 = vpack.c.b16 %v38, %v37
  %v42 = vpack.c.b16 %v40, %v39
  %vm45 = vcmask 261120
  %v47 = vsel %vm45, %v32, 0
  %49 = vmatpush.bf16.msra.mxu0 0
  %50 = vmatpush.bf16.msra.mxu0 0
  %51 = vmatpush.bf16.msra.mxu0 0
  %52 = vmatpush.bf16.msra.mxu0 0
  %53 = vmatpush.bf16.msra.mxu0 0
  %54 = vmatpush.bf16.msra.mxu0 0
  %55 = vmatpush.bf16.msra.mxu0 %v42
  %56 = vmatpush.bf16.msra.mxu0 %v41
  %57 = vmatmul.bf16.gmra.mxu0 %v47
  %v58 = vpop.f32.mrf.mxu0
  %v59 = vadd.f32 0.0, %v58
  %v60 = vpop.f32.mrf.mxu0
  %61 = vdwg.mxu0
  %v62 = vadd.f32 %v31, %v59
  %v63 = vxor.u32 %v62, 2147483648
  %v64 = vmul.f32 %v63, 1.442695
  %v65 = vpow.pop %v64
  %v66 = vadd.f32 %v65, 1.0
  %v67 = vrcp.pop %v66
  %v68 = vmul.f32 %v66, %v67
  %v69 = vsub.f32 1.0, %v68
  %v70 = vmul.f32 %v67, %v69
  %v71 = vadd.f32 %v67, %v70
  %vm72 = vweird.f32 %v66
  %vm73 = vweird.f32 %v67
  %vm74 = vmor %vm72, %vm73
  %v75 = vsel %vm74, %v67, %v71
  %v76 = vand.u32 2147483647, %v66
  %vm77 = vcmp.eq.f32.partialorder %v76, 8.507059e+37
  %v78 = vand.u32 %v66, 2147483648
  %v79 = vor.u32 1.1754944e-38, %v78
  %v80 = vsel %vm77, %v79, %v75
  %v81 = vmul.f32 1.0, %v80
  %v82 = vtanh.pop %v62
  %84 = vrot.lane.b32.xlu0 %v30, 32
  %v85 = vpop.permute.xlu0 %84
  %v87 = vmul.f32 %v81, %v85
  %89 = vrot.lane.b32.xlu0 %v82, 64
  %v90 = vpop.permute.xlu0 %89
  %v92 = vmul.f32 %v81, %v90
  %94 = vrot.lane.b32.xlu0 %v92, 32
  %v95 = vpop.permute.xlu0 %94
  %v97 = vadd.f32 %v87, %v95
  %v98 = vtanh.pop %v97
  %100 = vrot.lane.b32.xlu0 %v98, 64
  %v101 = vpop.permute.xlu0 %100
  %v103 = vmul.f32 %v81, %v101
  %105 = vrot.lane.b32.xlu0 %v103, 32
  %v106 = vpop.permute.xlu0 %105
  %108 = vst.msk [vmem:[#allocation4] sm:$0xff] %vm45, %v106
  %s109 = scalar_lea.vmem %s0, 8
  %v110 = vld [vmem:[%s109] sm:$0xff]
  %v111 = vpack.c.bf16 %v103, %v103
  %113 = vrot.lane.b32.xlu0 %v111, 32
  %v114 = vpop.permute.xlu0 %113
  %v116 = vsel %vm45, %v114, 0
  %118 = vmatpush.bf16.msra.mxu0 0
  %119 = vmatpush.bf16.msra.mxu0 0
  %120 = vmatpush.bf16.msra.mxu0 0
  %121 = vmatpush.bf16.msra.mxu0 0
  %122 = vmatpush.bf16.msra.mxu0 0
  %123 = vmatpush.bf16.msra.mxu0 0
  %124 = vmatpush.bf16.msra.mxu0 %v42
  %125 = vmatpush.bf16.msra.mxu0 %v41
  %126 = vmatmul.bf16.gmra.mxu0 %v116
  %v127 = vpop.f32.mrf.mxu0
  %v128 = vadd.f32 0.0, %v127
  %v129 = vpop.f32.mrf.mxu0
  %130 = vdwg.mxu0
  %v131 = vadd.f32 %v110, %v128
  %v132 = vxor.u32 %v131, 2147483648
  %v133 = vmul.f32 %v132, 1.442695
  %v134 = vpow.pop %v133
  %v135 = vadd.f32 %v134, 1.0
  %v136 = vrcp.pop %v135
  %v137 = vmul.f32 %v135, %v136
  %v138 = vsub.f32 1.0, %v137
  %v139 = vmul.f32 %v136, %v138
  %v140 = vadd.f32 %v136, %v139
  %vm141 = vweird.f32 %v135
  %vm142 = vweird.f32 %v136
  %vm143 = vmor %vm141, %vm142
  %v144 = vsel %vm143, %v136, %v140
  %v145 = vand.u32 2147483647, %v135
  %vm146 = vcmp.eq.f32.partialorder %v145, 8.507059e+37
  %v147 = vand.u32 %v135, 2147483648
  %v148 = vor.u32 1.1754944e-38, %v147
  %v149 = vsel %vm146, %v148, %v144
  %v150 = vmul.f32 1.0, %v149
  %v151 = vtanh.pop %v131
  %v152 = vmul.f32 %v150, %v97
  %154 = vrot.lane.b32.xlu0 %v151, 64
  %v155 = vpop.permute.xlu0 %154
  %v157 = vmul.f32 %v150, %v155
  %159 = vrot.lane.b32.xlu0 %v157, 32
  %v160 = vpop.permute.xlu0 %159
  %v162 = vadd.f32 %v152, %v160
  %v163 = vtanh.pop %v162
  %165 = vrot.lane.b32.xlu0 %v163, 64
  %v166 = vpop.permute.xlu0 %165
  %v168 = vmul.f32 %v150, %v166
  %170 = vrot.lane.b32.xlu0 %v168, 32
  %v171 = vpop.permute.xlu0 %170
  %s173 = scalar_lea.vmem [#allocation4], 8
  %174 = vst.msk [vmem:[%s173] sm:$0xff] %vm45, %v171
  %s175 = scalar_lea.vmem %s0, 16
  %v176 = vld [vmem:[%s175] sm:$0xff]
  %v177 = vpack.c.bf16 %v168, %v168
  %179 = vrot.lane.b32.xlu0 %v177, 32
  %v180 = vpop.permute.xlu0 %179
  %v182 = vsel %vm45, %v180, 0
  %184 = vmatpush.bf16.msra.mxu0 0
  %185 = vmatpush.bf16.msra.mxu0 0
  %186 = vmatpush.bf16.msra.mxu0 0
  %187 = vmatpush.bf16.msra.mxu0 0
  %188 = vmatpush.bf16.msra.mxu0 0
  %189 = vmatpush.bf16.msra.mxu0 0
  %190 = vmatpush.bf16.msra.mxu0 %v42
  %191 = vmatpush.bf16.msra.mxu0 %v41
  %192 = vmatmul.bf16.gmra.mxu0 %v182
  %v193 = vpop.f32.mrf.mxu0
  %v194 = vadd.f32 0.0, %v193
  %v195 = vpop.f32.mrf.mxu0
  %196 = vdwg.mxu0
  %v197 = vadd.f32 %v176, %v194
  %v198 = vxor.u32 %v197, 2147483648
  %v199 = vmul.f32 %v198, 1.442695
  %v200 = vpow.pop %v199
  %v201 = vadd.f32 %v200, 1.0
  %v202 = vrcp.pop %v201
  %v203 = vmul.f32 %v201, %v202
  %v204 = vsub.f32 1.0, %v203
  %v205 = vmul.f32 %v202, %v204
  %v206 = vadd.f32 %v202, %v205
  %vm207 = vweird.f32 %v201
  %vm208 = vweird.f32 %v202
  %vm209 = vmor %vm207, %vm208
  %v210 = vsel %vm209, %v202, %v206
  %v211 = vand.u32 2147483647, %v201
  %vm212 = vcmp.eq.f32.partialorder %v211, 8.507059e+37
  %v213 = vand.u32 %v201, 2147483648
  %v214 = vor.u32 1.1754944e-38, %v213
  %v215 = vsel %vm212, %v214, %v210
  %v216 = vmul.f32 1.0, %v215
  %v217 = vtanh.pop %v197
  %v218 = vmul.f32 %v216, %v162
  %220 = vrot.lane.b32.xlu0 %v217, 64
  %v221 = vpop.permute.xlu0 %220
  %v223 = vmul.f32 %v216, %v221
  %225 = vrot.lane.b32.xlu0 %v223, 32
  %v226 = vpop.permute.xlu0 %225
  %v228 = vadd.f32 %v218, %v226
  %v229 = vtanh.pop %v228
  %231 = vrot.lane.b32.xlu0 %v229, 64
  %v232 = vpop.permute.xlu0 %231
  %v234 = vmul.f32 %v216, %v232
  %236 = vrot.lane.b32.xlu0 %v234, 32
  %v237 = vpop.permute.xlu0 %236
  %s239 = scalar_lea.vmem [#allocation4], 16
  %240 = vst.msk [vmem:[%s239] sm:$0xff] %vm45, %v237
  %s241 = scalar_lea.vmem %s0, 24
  %v242 = vld [vmem:[%s241] sm:$0xff]
  %v243 = vpack.c.bf16 %v234, %v234
  %245 = vrot.lane.b32.xlu0 %v243, 32
  %v246 = vpop.permute.xlu0 %245
  %v248 = vsel %vm45, %v246, 0
  %250 = vmatpush.bf16.msra.mxu0 0
  %251 = vmatpush.bf16.msra.mxu0 0
  %252 = vmatpush.bf16.msra.mxu0 0
  %253 = vmatpush.bf16.msra.mxu0 0
  %254 = vmatpush.bf16.msra.mxu0 0
  %255 = vmatpush.bf16.msra.mxu0 0
  %256 = vmatpush.bf16.msra.mxu0 %v42
  %257 = vmatpush.bf16.msra.mxu0 %v41
  %258 = vmatmul.bf16.gmra.mxu0 %v248
  %v259 = vpop.f32.mrf.mxu0
  %v260 = vadd.f32 0.0, %v259
  %v261 = vpop.f32.mrf.mxu0
  %262 = vdwg.mxu0
  %v263 = vadd.f32 %v242, %v260
  %v264 = vxor.u32 %v263, 2147483648
  %v265 = vmul.f32 %v264, 1.442695
  %v266 = vpow.pop %v265
  %v267 = vadd.f32 %v266, 1.0
  %v268 = vrcp.pop %v267
  %v269 = vmul.f32 %v267, %v268
  %v270 = vsub.f32 1.0, %v269
  %v271 = vmul.f32 %v268, %v270
  %v272 = vadd.f32 %v268, %v271
  %vm273 = vweird.f32 %v267
  %vm274 = vweird.f32 %v268
  %vm275 = vmor %vm273, %vm274
  %v276 = vsel %vm275, %v268, %v272
  %v277 = vand.u32 2147483647, %v267
  %vm278 = vcmp.eq.f32.partialorder %v277, 8.507059e+37
  %v279 = vand.u32 %v267, 2147483648
  %v280 = vor.u32 1.1754944e-38, %v279
  %v281 = vsel %vm278, %v280, %v276
  %v282 = vmul.f32 1.0, %v281
  %v283 = vtanh.pop %v263
  %v284 = vmul.f32 %v282, %v228
  %286 = vrot.lane.b32.xlu0 %v283, 64
  %v287 = vpop.permute.xlu0 %286
  %v289 = vmul.f32 %v282, %v287
  %291 = vrot.lane.b32.xlu0 %v289, 32
  %v292 = vpop.permute.xlu0 %291
  %v294 = vadd.f32 %v284, %v292
  %v295 = vtanh.pop %v294
  %297 = vrot.lane.b32.xlu0 %v295, 64
  %v298 = vpop.permute.xlu0 %297
  %v300 = vmul.f32 %v282, %v298
  %302 = vrot.lane.b32.xlu0 %v300, 32
  %v303 = vpop.permute.xlu0 %302
  %s305 = scalar_lea.vmem [#allocation4], 24
  %306 = vst.msk [vmem:[%s305] sm:$0xff] %vm45, %v303
  %s307 = scalar_lea.vmem %s0, 32
  %v308 = vld [vmem:[%s307] sm:$0xff]
  %v309 = vpack.c.bf16 %v300, %v300
  %311 = vrot.lane.b32.xlu0 %v309, 32
  %v312 = vpop.permute.xlu0 %311
  %v314 = vsel %vm45, %v312, 0
  %316 = vmatpush.bf16.msra.mxu0 0
  %317 = vmatpush.bf16.msra.mxu0 0
  %318 = vmatpush.bf16.msra.mxu0 0
  %319 = vmatpush.bf16.msra.mxu0 0
  %320 = vmatpush.bf16.msra.mxu0 0
  %321 = vmatpush.bf16.msra.mxu0 0
  %322 = vmatpush.bf16.msra.mxu0 %v42
  %323 = vmatpush.bf16.msra.mxu0 %v41
  %324 = vmatmul.bf16.gmra.mxu0 %v314
  %v325 = vpop.f32.mrf.mxu0
  %v326 = vadd.f32 0.0, %v325
  %v327 = vpop.f32.mrf.mxu0
  %328 = vdwg.mxu0
  %v329 = vadd.f32 %v308, %v326
  %v330 = vxor.u32 %v329, 2147483648
  %v331 = vmul.f32 %v330, 1.442695
  %v332 = vpow.pop %v331
  %v333 = vadd.f32 %v332, 1.0
  %v334 = vrcp.pop %v333
  %v335 = vmul.f32 %v333, %v334
  %v336 = vsub.f32 1.0, %v335
  %v337 = vmul.f32 %v334, %v336
  %v338 = vadd.f32 %v334, %v337
  %vm339 = vweird.f32 %v333
  %vm340 = vweird.f32 %v334
  %vm341 = vmor %vm339, %vm340
  %v342 = vsel %vm341, %v334, %v338
  %v343 = vand.u32 2147483647, %v333
  %vm344 = vcmp.eq.f32.partialorder %v343, 8.507059e+37
  %v345 = vand.u32 %v333, 2147483648
  %v346 = vor.u32 1.1754944e-38, %v345
  %v347 = vsel %vm344, %v346, %v342
  %v348 = vmul.f32 1.0, %v347
  %v349 = vtanh.pop %v329
  %v350 = vmul.f32 %v348, %v294
  %352 = vrot.lane.b32.xlu0 %v349, 64
  %v353 = vpop.permute.xlu0 %352
  %v355 = vmul.f32 %v348, %v353
  %357 = vrot.lane.b32.xlu0 %v355, 32
  %v358 = vpop.permute.xlu0 %357
  %v360 = vadd.f32 %v350, %v358
  %v361 = vtanh.pop %v360
  %363 = vrot.lane.b32.xlu0 %v361, 64
  %v364 = vpop.permute.xlu0 %363
  %v366 = vmul.f32 %v348, %v364
  %368 = vrot.lane.b32.xlu0 %v366, 32
  %v369 = vpop.permute.xlu0 %368
  %s371 = scalar_lea.vmem [#allocation4], 32
  %372 = vst.msk [vmem:[%s371] sm:$0xff] %vm45, %v369
  %s373 = scalar_lea.vmem %s0, 40
  %v374 = vld [vmem:[%s373] sm:$0xff]
  %v375 = vpack.c.bf16 %v366, %v366
  %377 = vrot.lane.b32.xlu0 %v375, 32
  %v378 = vpop.permute.xlu0 %377
  %v380 = vsel %vm45, %v378, 0
  %382 = vmatpush.bf16.msra.mxu0 0
  %383 = vmatpush.bf16.msra.mxu0 0
  %384 = vmatpush.bf16.msra.mxu0 0
  %385 = vmatpush.bf16.msra.mxu0 0
  %386 = vmatpush.bf16.msra.mxu0 0
  %387 = vmatpush.bf16.msra.mxu0 0
  %388 = vmatpush.bf16.msra.mxu0 %v42
  %389 = vmatpush.bf16.msra.mxu0 %v41
  %390 = vmatmul.bf16.gmra.mxu0 %v380
  %v391 = vpop.f32.mrf.mxu0
  %v392 = vadd.f32 0.0, %v391
  %v393 = vpop.f32.mrf.mxu0
  %394 = vdwg.mxu0
  %v395 = vadd.f32 %v374, %v392
  %v396 = vxor.u32 %v395, 2147483648
  %v397 = vmul.f32 %v396, 1.442695
  %v398 = vpow.pop %v397
  %v399 = vadd.f32 %v398, 1.0
  %v400 = vrcp.pop %v399
  %v401 = vmul.f32 %v399, %v400
  %v402 = vsub.f32 1.0, %v401
  %v403 = vmul.f32 %v400, %v402
  %v404 = vadd.f32 %v400, %v403
  %vm405 = vweird.f32 %v399
  %vm406 = vweird.f32 %v400
  %vm407 = vmor %vm405, %vm406
  %v408 = vsel %vm407, %v400, %v404
  %v409 = vand.u32 2147483647, %v399
  %vm410 = vcmp.eq.f32.partialorder %v409, 8.507059e+37
  %v411 = vand.u32 %v399, 2147483648
  %v412 = vor.u32 1.1754944e-38, %v411
  %v413 = vsel %vm410, %v412, %v408
  %v414 = vmul.f32 1.0, %v413
  %v415 = vtanh.pop %v395
  %v416 = vmul.f32 %v414, %v360
  %418 = vrot.lane.b32.xlu0 %v415, 64
  %v419 = vpop.permute.xlu0 %418
  %v421 = vmul.f32 %v414, %v419
  %423 = vrot.lane.b32.xlu0 %v421, 32
  %v424 = vpop.permute.xlu0 %423
  %v426 = vadd.f32 %v416, %v424
  %v427 = vtanh.pop %v426
  %429 = vrot.lane.b32.xlu0 %v427, 64
  %v430 = vpop.permute.xlu0 %429
  %v432 = vmul.f32 %v414, %v430
  %434 = vrot.lane.b32.xlu0 %v432, 32
  %v435 = vpop.permute.xlu0 %434
  %s437 = scalar_lea.vmem [#allocation4], 40
  %438 = vst.msk [vmem:[%s437] sm:$0xff] %vm45, %v435
  %s439 = scalar_lea.vmem %s0, 48
  %v440 = vld [vmem:[%s439] sm:$0xff]
  %v441 = vpack.c.bf16 %v432, %v432
  %443 = vrot.lane.b32.xlu0 %v441, 32
  %v444 = vpop.permute.xlu0 %443
  %v446 = vsel %vm45, %v444, 0
  %448 = vmatpush.bf16.msra.mxu0 0
  %449 = vmatpush.bf16.msra.mxu0 0
  %450 = vmatpush.bf16.msra.mxu0 0
  %451 = vmatpush.bf16.msra.mxu0 0
  %452 = vmatpush.bf16.msra.mxu0 0
  %453 = vmatpush.bf16.msra.mxu0 0
  %454 = vmatpush.bf16.msra.mxu0 %v42
  %455 = vmatpush.bf16.msra.mxu0 %v41
  %456 = vmatmul.bf16.gmra.mxu0 %v446
  %v457 = vpop.f32.mrf.mxu0
  %v458 = vadd.f32 0.0, %v457
  %v459 = vpop.f32.mrf.mxu0
  %460 = vdwg.mxu0
  %v461 = vadd.f32 %v440, %v458
  %v462 = vxor.u32 %v461, 2147483648
  %v463 = vmul.f32 %v462, 1.442695
  %v464 = vpow.pop %v463
  %v465 = vadd.f32 %v464, 1.0
  %v466 = vrcp.pop %v465
  %v467 = vmul.f32 %v465, %v466
  %v468 = vsub.f32 1.0, %v467
  %v469 = vmul.f32 %v466, %v468
  %v470 = vadd.f32 %v466, %v469
  %vm471 = vweird.f32 %v465
  %vm472 = vweird.f32 %v466
  %vm473 = vmor %vm471, %vm472
  %v474 = vsel %vm473, %v466, %v470
  %v475 = vand.u32 2147483647, %v465
  %vm476 = vcmp.eq.f32.partialorder %v475, 8.507059e+37
  %v477 = vand.u32 %v465, 2147483648
  %v478 = vor.u32 1.1754944e-38, %v477
  %v479 = vsel %vm476, %v478, %v474
  %v480 = vmul.f32 1.0, %v479
  %v481 = vtanh.pop %v461
  %v482 = vmul.f32 %v480, %v426
  %484 = vrot.lane.b32.xlu0 %v481, 64
  %v485 = vpop.permute.xlu0 %484
  %v487 = vmul.f32 %v480, %v485
  %489 = vrot.lane.b32.xlu0 %v487, 32
  %v490 = vpop.permute.xlu0 %489
  %v492 = vadd.f32 %v482, %v490
  %v493 = vtanh.pop %v492
  %495 = vrot.lane.b32.xlu0 %v493, 64
  %v496 = vpop.permute.xlu0 %495
  %v498 = vmul.f32 %v480, %v496
  %500 = vrot.lane.b32.xlu0 %v498, 32
  %v501 = vpop.permute.xlu0 %500
  %s503 = scalar_lea.vmem [#allocation4], 48
  %504 = vst.msk [vmem:[%s503] sm:$0xff] %vm45, %v501
  %s505 = scalar_lea.vmem %s0, 56
  %v506 = vld [vmem:[%s505] sm:$0xff]
  %v507 = vpack.c.bf16 %v498, %v498
  %509 = vrot.lane.b32.xlu0 %v507, 32
  %v510 = vpop.permute.xlu0 %509
  %v512 = vsel %vm45, %v510, 0
  %514 = vmatpush.bf16.msra.mxu0 0
  %515 = vmatpush.bf16.msra.mxu0 0
  %516 = vmatpush.bf16.msra.mxu0 0
  %517 = vmatpush.bf16.msra.mxu0 0
  %518 = vmatpush.bf16.msra.mxu0 0
  %519 = vmatpush.bf16.msra.mxu0 0
  %520 = vmatpush.bf16.msra.mxu0 %v42
  %521 = vmatpush.bf16.msra.mxu0 %v41
  %522 = vmatmul.bf16.gmra.mxu0 %v512
  %v523 = vpop.f32.mrf.mxu0
  %v524 = vadd.f32 0.0, %v523
  %v525 = vpop.f32.mrf.mxu0
  %526 = vdwg.mxu0
  %v527 = vadd.f32 %v506, %v524
  %v528 = vxor.u32 %v527, 2147483648
  %v529 = vmul.f32 %v528, 1.442695
  %v530 = vpow.pop %v529
  %v531 = vadd.f32 %v530, 1.0
  %v532 = vrcp.pop %v531
  %v533 = vmul.f32 %v531, %v532
  %v534 = vsub.f32 1.0, %v533
  %v535 = vmul.f32 %v532, %v534
  %v536 = vadd.f32 %v532, %v535
  %vm537 = vweird.f32 %v531
  %vm538 = vweird.f32 %v532
  %vm539 = vmor %vm537, %vm538
  %v540 = vsel %vm539, %v532, %v536
  %v541 = vand.u32 2147483647, %v531
  %vm542 = vcmp.eq.f32.partialorder %v541, 8.507059e+37
  %v543 = vand.u32 %v531, 2147483648
  %v544 = vor.u32 1.1754944e-38, %v543
  %v545 = vsel %vm542, %v544, %v540
  %v546 = vmul.f32 1.0, %v545
  %v547 = vtanh.pop %v527
  %v548 = vmul.f32 %v546, %v492
  %550 = vrot.lane.b32.xlu0 %v547, 64
  %v551 = vpop.permute.xlu0 %550
  %v553 = vmul.f32 %v546, %v551
  %555 = vrot.lane.b32.xlu0 %v553, 32
  %v556 = vpop.permute.xlu0 %555
  %v558 = vadd.f32 %v548, %v556
  %v559 = vtanh.pop %v558
  %561 = vrot.lane.b32.xlu0 %v559, 64
  %v562 = vpop.permute.xlu0 %561
  %v564 = vmul.f32 %v546, %v562
  %566 = vrot.lane.b32.xlu0 %v564, 32
  %v567 = vpop.permute.xlu0 %566
  %s569 = scalar_lea.vmem [#allocation4], 56
  %570 = vst.msk [vmem:[%s569] sm:$0xff] %vm45, %v567
  %571 = vst.msk [vmem:[#allocation2] sm:$0xff] %vm45, %v567
  %573 = vrot.lane.b32.xlu0 %v558, 96
  %v574 = vpop.permute.xlu0 %573
  %576 = vst.msk [vmem:[#allocation3] sm:$0xff] %vm45, %v574
  %v577 = vld [vmem:[#allocation4] sm:$0xff]
  %v578 = vld [vmem:[#allocation4 + $0x8] sm:$0xff]
  %v579 = vld [vmem:[#allocation4 + $0x10] sm:$0xff]
  %v580 = vld [vmem:[#allocation4 + $0x18] sm:$0xff]
  %v581 = vld [vmem:[#allocation4 + $0x20] sm:$0xff]
  %v582 = vld [vmem:[#allocation4 + $0x28] sm:$0xff]
  %v583 = vld [vmem:[#allocation4 + $0x30] sm:$0xff]
  %v584 = vld [vmem:[#allocation4 + $0x38] sm:$0xff]
  %v585 = vsel %vm45, %v577, 0.0
  %586 = vadd.xlane.f32.xlu0 %v585
  %v587 = vpop.xlane.xlu0 %586
  %v588 = vsel %vm45, %v578, 0.0
  %589 = vadd.xlane.f32.xlu0 %v588
  %v590 = vpop.xlane.xlu0 %589
  %v591 = vsel %vm45, %v579, 0.0
  %592 = vadd.xlane.f32.xlu0 %v591
  %v593 = vpop.xlane.xlu0 %592
  %v594 = vsel %vm45, %v580, 0.0
  %595 = vadd.xlane.f32.xlu0 %v594
  %v596 = vpop.xlane.xlu0 %595
  %v597 = vsel %vm45, %v581, 0.0
  %598 = vadd.xlane.f32.xlu0 %v597
  %v599 = vpop.xlane.xlu0 %598
  %v600 = vsel %vm45, %v582, 0.0
  %601 = vadd.xlane.f32.xlu0 %v600
  %v602 = vpop.xlane.xlu0 %601
  %v603 = vsel %vm45, %v583, 0.0
  %604 = vadd.xlane.f32.xlu0 %v603
  %v605 = vpop.xlane.xlu0 %604
  %v606 = vsel %vm45, %v584, 0.0
  %607 = vadd.xlane.f32.xlu0 %v606
  %v608 = vpop.xlane.xlu0 %607
  %v609 = vrcp.pop 32.0
  %v610 = vmul.f32 32.0, %v609
  %v611 = vsub.f32 1.0, %v610
  %v612 = vmul.f32 %v609, %v611
  %v613 = vadd.f32 %v609, %v612
  %vm614 = vweird.f32 %v609
  %v615 = vsel %vm614, %v609, %v613
  %v616 = vmul.f32 %v587, %v615
  %v617 = vmul.f32 %v590, %v615
  %v618 = vmul.f32 %v593, %v615
  %v619 = vmul.f32 %v596, %v615
  %v620 = vmul.f32 %v599, %v615
  %v621 = vmul.f32 %v602, %v615
  %v622 = vmul.f32 %v605, %v615
  %v623 = vmul.f32 %v608, %v615
  %v624 = vsub.f32 %v577, %v616
  %v625 = vsub.f32 %v578, %v617
  %v626 = vsub.f32 %v579, %v618
  %v627 = vsub.f32 %v580, %v619
  %v628 = vsub.f32 %v581, %v620
  %v629 = vsub.f32 %v582, %v621
  %v630 = vsub.f32 %v583, %v622
  %v631 = vsub.f32 %v584, %v623
  %v632 = vmul.f32 %v624, %v624
  %v633 = vmul.f32 %v625, %v625
  %v634 = vmul.f32 %v626, %v626
  %v635 = vmul.f32 %v627, %v627
  %v636 = vmul.f32 %v628, %v628
  %v637 = vmul.f32 %v629, %v629
  %v638 = vmul.f32 %v630, %v630
  %v639 = vmul.f32 %v631, %v631
  %v640 = vsel %vm45, %v632, 0.0
  %641 = vadd.xlane.f32.xlu0 %v640
  %v642 = vpop.xlane.xlu0 %641
  %v643 = vsel %vm45, %v633, 0.0
  %644 = vadd.xlane.f32.xlu0 %v643
  %v645 = vpop.xlane.xlu0 %644
  %v646 = vsel %vm45, %v634, 0.0
  %647 = vadd.xlane.f32.xlu0 %v646
  %v648 = vpop.xlane.xlu0 %647
  %v649 = vsel %vm45, %v635, 0.0
  %650 = vadd.xlane.f32.xlu0 %v649
  %v651 = vpop.xlane.xlu0 %650
  %v652 = vsel %vm45, %v636, 0.0
  %653 = vadd.xlane.f32.xlu0 %v652
  %v654 = vpop.xlane.xlu0 %653
  %v655 = vsel %vm45, %v637, 0.0
  %656 = vadd.xlane.f32.xlu0 %v655
  %v657 = vpop.xlane.xlu0 %656
  %v658 = vsel %vm45, %v638, 0.0
  %659 = vadd.xlane.f32.xlu0 %v658
  %v660 = vpop.xlane.xlu0 %659
  %v661 = vsel %vm45, %v639, 0.0
  %662 = vadd.xlane.f32.xlu0 %v661
  %v663 = vpop.xlane.xlu0 %662
  %v664 = vmul.f32 %v642, %v615
  %v665 = vmul.f32 %v645, %v615
  %v666 = vmul.f32 %v648, %v615
  %v667 = vmul.f32 %v651, %v615
  %v668 = vmul.f32 %v654, %v615
  %v669 = vmul.f32 %v657, %v615
  %v670 = vmul.f32 %v660, %v615
  %v671 = vmul.f32 %v663, %v615
  %v672 = vadd.f32 %v664, 1e-05
  %v673 = vadd.f32 %v665, 1e-05
  %v674 = vadd.f32 %v666, 1e-05
  %v675 = vadd.f32 %v667, 1e-05
  %v676 = vadd.f32 %v668, 1e-05
  %v677 = vadd.f32 %v669, 1e-05
  %v678 = vadd.f32 %v670, 1e-05
  %v679 = vadd.f32 %v671, 1e-05
  %v680 = vrsqrt.pop %v672
  %v681 = vmul.f32 %v680, %v672
  %v682 = vmul.f32 %v681, %v680
  %v683 = vmul.f32 0.5, %v682
  %v684 = vsub.f32 1.5, %v683
  %v685 = vmul.f32 %v680, %v684
  %vm686 = vweird.f32 %v672
  %vm687 = vweird.f32 %v680
  %vm688 = vmor %vm686, %vm687
  %v689 = vsel %vm688, %v680, %v685
  %v690 = vrsqrt.pop %v673
  %v691 = vmul.f32 %v690, %v673
  %v692 = vmul.f32 %v691, %v690
  %v693 = vmul.f32 0.5, %v692
  %v694 = vsub.f32 1.5, %v693
  %v695 = vmul.f32 %v690, %v694
  %vm696 = vweird.f32 %v673
  %vm697 = vweird.f32 %v690
  %vm698 = vmor %vm696, %vm697
  %v699 = vsel %vm698, %v690, %v695
  %v700 = vrsqrt.pop %v674
  %v701 = vmul.f32 %v700, %v674
  %v702 = vmul.f32 %v701, %v700
  %v703 = vmul.f32 0.5, %v702
  %v704 = vsub.f32 1.5, %v703
  %v705 = vmul.f32 %v700, %v704
  %vm706 = vweird.f32 %v674
  %vm707 = vweird.f32 %v700
  %vm708 = vmor %vm706, %vm707
  %v709 = vsel %vm708, %v700, %v705
  %v710 = vrsqrt.pop %v675
  %v711 = vmul.f32 %v710, %v675
  %v712 = vmul.f32 %v711, %v710
  %v713 = vmul.f32 0.5, %v712
  %v714 = vsub.f32 1.5, %v713
  %v715 = vmul.f32 %v710, %v714
  %vm716 = vweird.f32 %v675
  %vm717 = vweird.f32 %v710
  %vm718 = vmor %vm716, %vm717
  %v719 = vsel %vm718, %v710, %v715
  %v720 = vrsqrt.pop %v676
  %v721 = vmul.f32 %v720, %v676
  %v722 = vmul.f32 %v721, %v720
  %v723 = vmul.f32 0.5, %v722
  %v724 = vsub.f32 1.5, %v723
  %v725 = vmul.f32 %v720, %v724
  %vm726 = vweird.f32 %v676
  %vm727 = vweird.f32 %v720
  %vm728 = vmor %vm726, %vm727
  %v729 = vsel %vm728, %v720, %v725
  %v730 = vrsqrt.pop %v677
  %v731 = vmul.f32 %v730, %v677
  %v732 = vmul.f32 %v731, %v730
  %v733 = vmul.f32 0.5, %v732
  %v734 = vsub.f32 1.5, %v733
  %v735 = vmul.f32 %v730, %v734
  %vm736 = vweird.f32 %v677
  %vm737 = vweird.f32 %v730
  %vm738 = vmor %vm736, %vm737
  %v739 = vsel %vm738, %v730, %v735
  %v740 = vrsqrt.pop %v678
  %v741 = vmul.f32 %v740, %v678
  %v742 = vmul.f32 %v741, %v740
  %v743 = vmul.f32 0.5, %v742
  %v744 = vsub.f32 1.5, %v743
  %v745 = vmul.f32 %v740, %v744
  %vm746 = vweird.f32 %v678
  %vm747 = vweird.f32 %v740
  %vm748 = vmor %vm746, %vm747
  %v749 = vsel %vm748, %v740, %v745
  %v750 = vrsqrt.pop %v679
  %v751 = vmul.f32 %v750, %v679
  %v752 = vmul.f32 %v751, %v750
  %v753 = vmul.f32 0.5, %v752
  %v754 = vsub.f32 1.5, %v753
  %v755 = vmul.f32 %v750, %v754
  %vm756 = vweird.f32 %v679
  %vm757 = vweird.f32 %v750
  %vm758 = vmor %vm756, %vm757
  %v759 = vsel %vm758, %v750, %v755
  %v760 = vmul.f32 %v624, %v689
  %v761 = vmul.f32 %v625, %v699
  %v762 = vmul.f32 %v626, %v709
  %v763 = vmul.f32 %v627, %v719
  %v764 = vmul.f32 %v628, %v729
  %v765 = vmul.f32 %v629, %v739
  %v766 = vmul.f32 %v630, %v749
  %v767 = vmul.f32 %v631, %v759
  %v768 = vld [vmem:[%s2] sm:$0x1]
  %v770 = vperm.slane %v768, 0
  %v772 = vmul.f32 %v760, %v770
  %v773 = vmul.f32 %v761, %v770
  %v774 = vmul.f32 %v762, %v770
  %v775 = vmul.f32 %v763, %v770
  %v776 = vmul.f32 %v764, %v770
  %v777 = vmul.f32 %v765, %v770
  %v778 = vmul.f32 %v766, %v770
  %v779 = vmul.f32 %v767, %v770
  %v780 = vld [vmem:[%s3] sm:$0x1]
  %v782 = vperm.slane %v780, 0
  %v784 = vadd.f32 %v772, %v782
  %v785 = vadd.f32 %v773, %v782
  %v786 = vadd.f32 %v774, %v782
  %v787 = vadd.f32 %v775, %v782
  %v788 = vadd.f32 %v776, %v782
  %v789 = vadd.f32 %v777, %v782
  %v790 = vadd.f32 %v778, %v782
  %v791 = vadd.f32 %v779, %v782
  %v792 = vpack.c.bf16 %v784, %v784
  %v793 = vpack.c.bf16 %v785, %v785
  %v794 = vpack.c.bf16 %v786, %v786
  %v795 = vpack.c.bf16 %v787, %v787
  %v796 = vpack.c.bf16 %v788, %v788
  %v797 = vpack.c.bf16 %v789, %v789
  %v798 = vpack.c.bf16 %v790, %v790
  %v799 = vpack.c.bf16 %v791, %v791
  %vm800 = vcmask 257024
  %801 = vst.msk [vmem:[%s4] sm:$0xf] %vm800, %v792
  %802 = vst.msk [vmem:[%s4 + $0x4] sm:$0xf] %vm800, %v793
  %803 = vst.msk [vmem:[%s4 + $0x8] sm:$0xf] %vm800, %v794
  %804 = vst.msk [vmem:[%s4 + $0xc] sm:$0xf] %vm800, %v795
  %805 = vst.msk [vmem:[%s4 + $0x10] sm:$0xf] %vm800, %v796
  %806 = vst.msk [vmem:[%s4 + $0x14] sm:$0xf] %vm800, %v797
  %807 = vst.msk [vmem:[%s4 + $0x18] sm:$0xf] %vm800, %v798
  %808 = vst.msk [vmem:[%s4 + $0x1c] sm:$0xf] %vm800, %v799
  // Predicated region
  $region22: #{lstm_graph_forward.2} parent=0 // pred_check
    _
  $region23: #{lstm_graph_forward.2} parent=0 // pred_check_branch
    %810 = sbr.rel (0) target = $region25
  $region24: #{lstm_graph_forward.2} parent=0 // pred_region
    _
  $region25: #{lstm_graph_forward.2} parent=0 // pred_fallthru
    _
  // Predicated region
  $region26: #{lstm_graph_forward.2} parent=0 // pred_check
    _
  $region27: #{lstm_graph_forward.2} parent=0 // pred_check_branch
    %812 = sbr.rel (0) target = $region29
  $region28: #{lstm_graph_forward.2} parent=0 // pred_region
    _
  $region29: #{lstm_graph_forward.2} parent=0 // pred_fallthru
    _

// kernel: lstm_graph_forward.3
$region0: #{lstm_graph_forward.3}
  #allocation0 [shape = 'u32[]', space=smem, size = 0x4, offset = 0x4, fixed_abs, tag = 'smem constant byte address 0x4 - core index']
  #allocation1 [shape = 'u32[72,128]{1,0:T(1,128)}', space=vmem, size = 0x9000, scoped, tag = 'internal scratch']
  #allocation2 [shape = 'f32[8,8,128]{2,1,0:T(8,128)}', space=vmem, size = 0x8000, scoped, tag = 'scratch operand']
  #allocation3 [shape = 'f32[8,32]{1,0:T(8,128)}', space=vmem, size = 0x1000, scoped, tag = 'scratch operand']
  #allocation4 [shape = 'f32[8,32]{1,0:T(8,128)}', space=vmem, size = 0x1000, scoped, tag = 'scratch operand']
  %s0 = inlined_call_operand.vmem [shape: bf16[8,8,32], index: 0, kind: input, shape index: {}]
  %s1 = inlined_call_operand.vmem [shape: bf16[32,128], index: 1, kind: input, shape index: {}]
  %s2 = inlined_call_operand.vmem [shape: bf16[32,128], index: 2, kind: input, shape index: {}]
  %s3 = inlined_call_operand.vmem [shape: f32[1,128], index: 3, kind: input, shape index: {}]
  %s4 = inlined_call_operand.vmem [shape: f32[8,32], index: 4, kind: output, shape index: {}]
  %s5 = sld [smem:[#allocation0]]
  $region34: #{lstm_graph_forward.3} parent=0
    _
  %s7 = ssub.s32 1, %s5
  %s8 = scalar_select 0, %s7, %s5
  // Predicated region
  $region2: #{lstm_graph_forward.3} parent=0 // pred_check
    _
  $region3: #{lstm_graph_forward.3} parent=0 // pred_check_branch
    %10 = sbr.rel (0) target = $region5
  $region4: #{lstm_graph_forward.3} parent=0 // pred_region
    _
  $region5: #{lstm_graph_forward.3} parent=0 // pred_fallthru
    _
  // Predicated region
  $region6: #{lstm_graph_forward.3} parent=0 // pred_check
    _
  $region7: #{lstm_graph_forward.3} parent=0 // pred_check_branch
    %12 = sbr.rel (0) target = $region9
  $region8: #{lstm_graph_forward.3} parent=0 // pred_region
    _
  $region9: #{lstm_graph_forward.3} parent=0 // pred_fallthru
    _
  // Predicated region
  $region10: #{lstm_graph_forward.3} parent=0 // pred_check
    _
  $region11: #{lstm_graph_forward.3} parent=0 // pred_check_branch
    %14 = sbr.rel (0) target = $region13
  $region12: #{lstm_graph_forward.3} parent=0 // pred_region
    _
  $region13: #{lstm_graph_forward.3} parent=0 // pred_fallthru
    _
  // Predicated region
  $region14: #{lstm_graph_forward.3} parent=0 // pred_check
    _
  $region15: #{lstm_graph_forward.3} parent=0 // pred_check_branch
    %16 = sbr.rel (0) target = $region17
  $region16: #{lstm_graph_forward.3} parent=0 // pred_region
    _
  $region17: #{lstm_graph_forward.3} parent=0 // pred_fallthru
    _
  %p18 = scmp.eq.s32.totalorder 0, 0
  // Predicated region
  $region18: #{lstm_graph_forward.3} parent=0 // pred_check
    %p19 = pneg %p18
  $region19: #{lstm_graph_forward.3} parent=0 // pred_check_branch
    %21 = sbr.rel (%p19) target = $region21
  $region20: #{lstm_graph_forward.3} parent=0 // pred_region
    %vm22 = vcmask 261120
    %23 = vst.msk [vmem:[#allocation3] sm:$0xff] %vm22, 0.0
    %24 = vst.msk [vmem:[#allocation4] sm:$0xff] %vm22, 0.0
  $region21: #{lstm_graph_forward.3} parent=0 // pred_fallthru
    _
  %v25 = vld [vmem:[%s0] sm:$0xf]
  %v26 = vld [vmem:[%s0 + $0x4] sm:$0xf]
  %v27 = vld [vmem:[%s0 + $0x8] sm:$0xf]
  %v28 = vld [vmem:[%s0 + $0xc] sm:$0xf]
  %v29 = vld [vmem:[%s0 + $0x10] sm:$0xf]
  %v30 = vld [vmem:[%s0 + $0x14] sm:$0xf]
  %v31 = vld [vmem:[%s0 + $0x18] sm:$0xf]
  %v32 = vld [vmem:[%s0 + $0x1c] sm:$0xf]
  %v33 = vld [vmem:[%s1] sm:$0xf]
  %v34 = vld [vmem:[%s1 + $0x4] sm:$0xf]
  %v35 = vld [vmem:[%s1 + $0x8] sm:$0xf]
  %v36 = vld [vmem:[%s1 + $0xc] sm:$0xf]
  %v37 = vld [vmem:[%s3] sm:$0x1]
  %v39 = vperm.slane %v37, 0
  %v49 = vunpack.c.l.b16 %v25
  %v50 = vunpack.c.l.b16 %v26
  %v51 = vunpack.c.l.b16 %v27
  %v52 = vunpack.c.l.b16 %v28
  %v53 = vunpack.c.l.b16 %v29
  %v54 = vunpack.c.l.b16 %v30
  %v55 = vunpack.c.l.b16 %v31
  %v56 = vunpack.c.l.b16 %v32
  %v57 = vpack.c.b16 %v50, %v49
  %v58 = vpack.c.b16 %v52, %v51
  %v59 = vpack.c.b16 %v54, %v53
  %v60 = vpack.c.b16 %v56, %v55
  %v65 = vunpack.c.l.b16 %v33
  %v66 = vunpack.c.l.b16 %v34
  %v67 = vunpack.c.l.b16 %v35
  %v68 = vunpack.c.l.b16 %v36
  %v69 = vpack.c.b16 %v66, %v65
  %v70 = vpack.c.b16 %v68, %v67
  %vm73 = vcmask 261120
  %v75 = vsel %vm73, %v57, 0
  %v78 = vsel %vm73, %v58, 0
  %v81 = vsel %vm73, %v59, 0
  %v84 = vsel %vm73, %v60, 0
  %86 = vmatpush.bf16.msra.mxu0 0
  %87 = vmatpush.bf16.msra.mxu0 0
  %88 = vmatpush.bf16.msra.mxu0 0
  %89 = vmatpush.bf16.msra.mxu0 0
  %90 = vmatpush.bf16.msra.mxu0 0
  %91 = vmatpush.bf16.msra.mxu0 0
  %92 = vmatpush.bf16.msra.mxu0 %v70
  %93 = vmatpush.bf16.msra.mxu0 %v69
  %94 = vmatmul.bf16.gmra.mxu0 %v75
  %v95 = vpop.f32.mrf.mxu0
  %v96 = vadd.f32 %v39, %v95
  %v97 = vpop.f32.mrf.mxu0
  %v98 = vadd.f32 %v39, %v97
  %99 = vmatmul.bf16.gmra.mxu0 %v78
  %v100 = vpop.f32.mrf.mxu0
  %v101 = vadd.f32 %v39, %v100
  %v102 = vpop.f32.mrf.mxu0
  %v103 = vadd.f32 %v39, %v102
  %104 = vmatmul.bf16.gmra.mxu0 %v81
  %v105 = vpop.f32.mrf.mxu0
  %v106 = vadd.f32 %v39, %v105
  %v107 = vpop.f32.mrf.mxu0
  %v108 = vadd.f32 %v39, %v107
  %109 = vmatmul.bf16.gmra.mxu0 %v84
  %v110 = vpop.f32.mrf.mxu0
  %v111 = vadd.f32 %v39, %v110
  %v112 = vpop.f32.mrf.mxu0
  %v113 = vadd.f32 %v39, %v112
  %114 = vdwg.mxu0
  %115 = vst [vmem:[#allocation2] sm:$0xff] %v96
  %116 = vst [vmem:[#allocation2 + $0x8] sm:$0xff] %v98
  %117 = vst [vmem:[#allocation2 + $0x10] sm:$0xff] %v101
  %118 = vst [vmem:[#allocation2 + $0x18] sm:$0xff] %v103
  %119 = vst [vmem:[#allocation2 + $0x20] sm:$0xff] %v106
  %120 = vst [vmem:[#allocation2 + $0x28] sm:$0xff] %v108
  %121 = vst [vmem:[#allocation2 + $0x30] sm:$0xff] %v111
  %122 = vst [vmem:[#allocation2 + $0x38] sm:$0xff] %v113
  %v123 = vld [vmem:[%s2] sm:$0xf]
  %v124 = vld [vmem:[%s2 + $0x4] sm:$0xf]
  %v125 = vld [vmem:[%s2 + $0x8] sm:$0xf]
  %v126 = vld [vmem:[%s2 + $0xc] sm:$0xf]
  %v127 = vld [vmem:[#allocation3] sm:$0xff]
  %v128 = vld [vmem:[#allocation4] sm:$0xff]
  %v129 = vld [vmem:[#allocation2] sm:$0xff]
  %v130 = vpack.c.bf16 %v127, %v127
  %v135 = vunpack.c.l.b16 %v123
  %v136 = vunpack.c.l.b16 %v124
  %v137 = vunpack.c.l.b16 %v125
  %v138 = vunpack.c.l.b16 %v126
  %v139 = vpack.c.b16 %v136, %v135
  %v140 = vpack.c.b16 %v138, %v137
  %v144 = vsel %vm73, %v130, 0
  %146 = vmatpush.bf16.msra.mxu0 0
  %147 = vmatpush.bf16.msra.mxu0 0
  %148 = vmatpush.bf16.msra.mxu0 0
  %149 = vmatpush.bf16.msra.mxu0 0
  %150 = vmatpush.bf16.msra.mxu0 0
  %151 = vmatpush.bf16.msra.mxu0 0
  %152 = vmatpush.bf16.msra.mxu0 %v140
  %153 = vmatpush.bf16.msra.mxu0 %v139
  %154 = vmatmul.bf16.gmra.mxu0 %v144
  %v155 = vpop.f32.mrf.mxu0
  %v156 = vadd.f32 0.0, %v155
  %v157 = vpop.f32.mrf.mxu0
  %158 = vdwg.mxu0
  %v159 = vadd.f32 %v129, %v156
  %v160 = vxor.u32 %v159, 2147483648
  %v161 = vmul.f32 %v160, 1.442695
  %v162 = vpow.pop %v161
  %v163 = vadd.f32 %v162, 1.0
  %v164 = vrcp.pop %v163
  %v165 = vmul.f32 %v163, %v164
  %v166 = vsub.f32 1.0, %v165
  %v167 = vmul.f32 %v164, %v166
  %v168 = vadd.f32 %v164, %v167
  %vm169 = vweird.f32 %v163
  %vm170 = vweird.f32 %v164
  %vm171 = vmor %vm169, %vm170
  %v172 = vsel %vm171, %v164, %v168
  %v173 = vand.u32 2147483647, %v163
  %vm174 = vcmp.eq.f32.partialorder %v173, 8.507059e+37
  %v175 = vand.u32 %v163, 2147483648
  %v176 = vor.u32 1.1754944e-38, %v175
  %v177 = vsel %vm174, %v176, %v172
  %v178 = vmul.f32 1.0, %v177
  %v179 = vtanh.pop %v159
  %181 = vrot.lane.b32.xlu0 %v128, 32
  %v182 = vpop.permute.xlu0 %181
  %v184 = vmul.f32 %v178, %v182
  %186 = vrot.lane.b32.xlu0 %v179, 64
  %v187 = vpop.permute.xlu0 %186
  %v189 = vmul.f32 %v178, %v187
  %191 = vrot.lane.b32.xlu0 %v189, 32
  %v192 = vpop.permute.xlu0 %191
  %v194 = vadd.f32 %v184, %v192
  %v195 = vtanh.pop %v194
  %197 = vrot.lane.b32.xlu0 %v195, 64
  %v198 = vpop.permute.xlu0 %197
  %v200 = vmul.f32 %v178, %v198
  %s201 = scalar_lea.vmem [#allocation2], 8
  %v202 = vld [vmem:[%s201] sm:$0xff]
  %v203 = vpack.c.bf16 %v200, %v200
  %205 = vrot.lane.b32.xlu0 %v203, 32
  %v206 = vpop.permute.xlu0 %205
  %v208 = vsel %vm73, %v206, 0
  %210 = vmatpush.bf16.msra.mxu0 0
  %211 = vmatpush.bf16.msra.mxu0 0
  %212 = vmatpush.bf16.msra.mxu0 0
  %213 = vmatpush.bf16.msra.mxu0 0
  %214 = vmatpush.bf16.msra.mxu0 0
  %215 = vmatpush.bf16.msra.mxu0 0
  %216 = vmatpush.bf16.msra.mxu0 %v140
  %217 = vmatpush.bf16.msra.mxu0 %v139
  %218 = vmatmul.bf16.gmra.mxu0 %v208
  %v219 = vpop.f32.mrf.mxu0
  %v220 = vadd.f32 0.0, %v219
  %v221 = vpop.f32.mrf.mxu0
  %222 = vdwg.mxu0
  %v223 = vadd.f32 %v202, %v220
  %v224 = vxor.u32 %v223, 2147483648
  %v225 = vmul.f32 %v224, 1.442695
  %v226 = vpow.pop %v225
  %v227 = vadd.f32 %v226, 1.0
  %v228 = vrcp.pop %v227
  %v229 = vmul.f32 %v227, %v228
  %v230 = vsub.f32 1.0, %v229
  %v231 = vmul.f32 %v228, %v230
  %v232 = vadd.f32 %v228, %v231
  %vm233 = vweird.f32 %v227
  %vm234 = vweird.f32 %v228
  %vm235 = vmor %vm233, %vm234
  %v236 = vsel %vm235, %v228, %v232
  %v237 = vand.u32 2147483647, %v227
  %vm238 = vcmp.eq.f32.partialorder %v237, 8.507059e+37
  %v239 = vand.u32 %v227, 2147483648
  %v240 = vor.u32 1.1754944e-38, %v239
  %v241 = vsel %vm238, %v240, %v236
  %v242 = vmul.f32 1.0, %v241
  %v243 = vtanh.pop %v223
  %v244 = vmul.f32 %v242, %v194
  %246 = vrot.lane.b32.xlu0 %v243, 64
  %v247 = vpop.permute.xlu0 %246
  %v249 = vmul.f32 %v242, %v247
  %251 = vrot.lane.b32.xlu0 %v249, 32
  %v252 = vpop.permute.xlu0 %251
  %v254 = vadd.f32 %v244, %v252
  %v255 = vtanh.pop %v254
  %257 = vrot.lane.b32.xlu0 %v255, 64
  %v258 = vpop.permute.xlu0 %257
  %v260 = vmul.f32 %v242, %v258
  %s261 = scalar_lea.vmem [#allocation2], 16
  %v262 = vld [vmem:[%s261] sm:$0xff]
  %v263 = vpack.c.bf16 %v260, %v260
  %265 = vrot.lane.b32.xlu0 %v263, 32
  %v266 = vpop.permute.xlu0 %265
  %v268 = vsel %vm73, %v266, 0
  %270 = vmatpush.bf16.msra.mxu0 0
  %271 = vmatpush.bf16.msra.mxu0 0
  %272 = vmatpush.bf16.msra.mxu0 0
  %273 = vmatpush.bf16.msra.mxu0 0
  %274 = vmatpush.bf16.msra.mxu0 0
  %275 = vmatpush.bf16.msra.mxu0 0
  %276 = vmatpush.bf16.msra.mxu0 %v140
  %277 = vmatpush.bf16.msra.mxu0 %v139
  %278 = vmatmul.bf16.gmra.mxu0 %v268
  %v279 = vpop.f32.mrf.mxu0
  %v280 = vadd.f32 0.0, %v279
  %v281 = vpop.f32.mrf.mxu0
  %282 = vdwg.mxu0
  %v283 = vadd.f32 %v262, %v280
  %v284 = vxor.u32 %v283, 2147483648
  %v285 = vmul.f32 %v284, 1.442695
  %v286 = vpow.pop %v285
  %v287 = vadd.f32 %v286, 1.0
  %v288 = vrcp.pop %v287
  %v289 = vmul.f32 %v287, %v288
  %v290 = vsub.f32 1.0, %v289
  %v291 = vmul.f32 %v288, %v290
  %v292 = vadd.f32 %v288, %v291
  %vm293 = vweird.f32 %v287
  %vm294 = vweird.f32 %v288
  %vm295 = vmor %vm293, %vm294
  %v296 = vsel %vm295, %v288, %v292
  %v297 = vand.u32 2147483647, %v287
  %vm298 = vcmp.eq.f32.partialorder %v297, 8.507059e+37
  %v299 = vand.u32 %v287, 2147483648
  %v300 = vor.u32 1.1754944e-38, %v299
  %v301 = vsel %vm298, %v300, %v296
  %v302 = vmul.f32 1.0, %v301
  %v303 = vtanh.pop %v283
  %v304 = vmul.f32 %v302, %v254
  %306 = vrot.lane.b32.xlu0 %v303, 64
  %v307 = vpop.permute.xlu0 %306
  %v309 = vmul.f32 %v302, %v307
  %311 = vrot.lane.b32.xlu0 %v309, 32
  %v312 = vpop.permute.xlu0 %311
  %v314 = vadd.f32 %v304, %v312
  %v315 = vtanh.pop %v314
  %317 = vrot.lane.b32.xlu0 %v315, 64
  %v318 = vpop.permute.xlu0 %317
  %v320 = vmul.f32 %v302, %v318
  %s321 = scalar_lea.vmem [#allocation2], 24
  %v322 = vld [vmem:[%s321] sm:$0xff]
  %v323 = vpack.c.bf16 %v320, %v320
  %325 = vrot.lane.b32.xlu0 %v323, 32
  %v326 = vpop.permute.xlu0 %325
  %v328 = vsel %vm73, %v326, 0
  %330 = vmatpush.bf16.msra.mxu0 0
  %331 = vmatpush.bf16.msra.mxu0 0
  %332 = vmatpush.bf16.msra.mxu0 0
  %333 = vmatpush.bf16.msra.mxu0 0
  %334 = vmatpush.bf16.msra.mxu0 0
  %335 = vmatpush.bf16.msra.mxu0 0
  %336 = vmatpush.bf16.msra.mxu0 %v140
  %337 = vmatpush.bf16.msra.mxu0 %v139
  %338 = vmatmul.bf16.gmra.mxu0 %v328
  %v339 = vpop.f32.mrf.mxu0
  %v340 = vadd.f32 0.0, %v339
  %v341 = vpop.f32.mrf.mxu0
  %342 = vdwg.mxu0
  %v343 = vadd.f32 %v322, %v340
  %v344 = vxor.u32 %v343, 2147483648
  %v345 = vmul.f32 %v344, 1.442695
  %v346 = vpow.pop %v345
  %v347 = vadd.f32 %v346, 1.0
  %v348 = vrcp.pop %v347
  %v349 = vmul.f32 %v347, %v348
  %v350 = vsub.f32 1.0, %v349
  %v351 = vmul.f32 %v348, %v350
  %v352 = vadd.f32 %v348, %v351
  %vm353 = vweird.f32 %v347
  %vm354 = vweird.f32 %v348
  %vm355 = vmor %vm353, %vm354
  %v356 = vsel %vm355, %v348, %v352
  %v357 = vand.u32 2147483647, %v347
  %vm358 = vcmp.eq.f32.partialorder %v357, 8.507059e+37
  %v359 = vand.u32 %v347, 2147483648
  %v360 = vor.u32 1.1754944e-38, %v359
  %v361 = vsel %vm358, %v360, %v356
  %v362 = vmul.f32 1.0, %v361
  %v363 = vtanh.pop %v343
  %v364 = vmul.f32 %v362, %v314
  %366 = vrot.lane.b32.xlu0 %v363, 64
  %v367 = vpop.permute.xlu0 %366
  %v369 = vmul.f32 %v362, %v367
  %371 = vrot.lane.b32.xlu0 %v369, 32
  %v372 = vpop.permute.xlu0 %371
  %v374 = vadd.f32 %v364, %v372
  %v375 = vtanh.pop %v374
  %377 = vrot.lane.b32.xlu0 %v375, 64
  %v378 = vpop.permute.xlu0 %377
  %v380 = vmul.f32 %v362, %v378
  %s381 = scalar_lea.vmem [#allocation2], 32
  %v382 = vld [vmem:[%s381] sm:$0xff]
  %v383 = vpack.c.bf16 %v380, %v380
  %385 = vrot.lane.b32.xlu0 %v383, 32
  %v386 = vpop.permute.xlu0 %385
  %v388 = vsel %vm73, %v386, 0
  %390 = vmatpush.bf16.msra.mxu0 0
  %391 = vmatpush.bf16.msra.mxu0 0
  %392 = vmatpush.bf16.msra.mxu0 0
  %393 = vmatpush.bf16.msra.mxu0 0
  %394 = vmatpush.bf16.msra.mxu0 0
  %395 = vmatpush.bf16.msra.mxu0 0
  %396 = vmatpush.bf16.msra.mxu0 %v140
  %397 = vmatpush.bf16.msra.mxu0 %v139
  %398 = vmatmul.bf16.gmra.mxu0 %v388
  %v399 = vpop.f32.mrf.mxu0
  %v400 = vadd.f32 0.0, %v399
  %v401 = vpop.f32.mrf.mxu0
  %402 = vdwg.mxu0
  %v403 = vadd.f32 %v382, %v400
  %v404 = vxor.u32 %v403, 2147483648
  %v405 = vmul.f32 %v404, 1.442695
  %v406 = vpow.pop %v405
  %v407 = vadd.f32 %v406, 1.0
  %v408 = vrcp.pop %v407
  %v409 = vmul.f32 %v407, %v408
  %v410 = vsub.f32 1.0, %v409
  %v411 = vmul.f32 %v408, %v410
  %v412 = vadd.f32 %v408, %v411
  %vm413 = vweird.f32 %v407
  %vm414 = vweird.f32 %v408
  %vm415 = vmor %vm413, %vm414
  %v416 = vsel %vm415, %v408, %v412
  %v417 = vand.u32 2147483647, %v407
  %vm418 = vcmp.eq.f32.partialorder %v417, 8.507059e+37
  %v419 = vand.u32 %v407, 2147483648
  %v420 = vor.u32 1.1754944e-38, %v419
  %v421 = vsel %vm418, %v420, %v416
  %v422 = vmul.f32 1.0, %v421
  %v423 = vtanh.pop %v403
  %v424 = vmul.f32 %v422, %v374
  %426 = vrot.lane.b32.xlu0 %v423, 64
  %v427 = vpop.permute.xlu0 %426
  %v429 = vmul.f32 %v422, %v427
  %431 = vrot.lane.b32.xlu0 %v429, 32
  %v432 = vpop.permute.xlu0 %431
  %v434 = vadd.f32 %v424, %v432
  %v435 = vtanh.pop %v434
  %437 = vrot.lane.b32.xlu0 %v435, 64
  %v438 = vpop.permute.xlu0 %437
  %v440 = vmul.f32 %v422, %v438
  %s441 = scalar_lea.vmem [#allocation2], 40
  %v442 = vld [vmem:[%s441] sm:$0xff]
  %v443 = vpack.c.bf16 %v440, %v440
  %445 = vrot.lane.b32.xlu0 %v443, 32
  %v446 = vpop.permute.xlu0 %445
  %v448 = vsel %vm73, %v446, 0
  %450 = vmatpush.bf16.msra.mxu0 0
  %451 = vmatpush.bf16.msra.mxu0 0
  %452 = vmatpush.bf16.msra.mxu0 0
  %453 = vmatpush.bf16.msra.mxu0 0
  %454 = vmatpush.bf16.msra.mxu0 0
  %455 = vmatpush.bf16.msra.mxu0 0
  %456 = vmatpush.bf16.msra.mxu0 %v140
  %457 = vmatpush.bf16.msra.mxu0 %v139
  %458 = vmatmul.bf16.gmra.mxu0 %v448
  %v459 = vpop.f32.mrf.mxu0
  %v460 = vadd.f32 0.0, %v459
  %v461 = vpop.f32.mrf.mxu0
  %462 = vdwg.mxu0
  %v463 = vadd.f32 %v442, %v460
  %v464 = vxor.u32 %v463, 2147483648
  %v465 = vmul.f32 %v464, 1.442695
  %v466 = vpow.pop %v465
  %v467 = vadd.f32 %v466, 1.0
  %v468 = vrcp.pop %v467
  %v469 = vmul.f32 %v467, %v468
  %v470 = vsub.f32 1.0, %v469
  %v471 = vmul.f32 %v468, %v470
  %v472 = vadd.f32 %v468, %v471
  %vm473 = vweird.f32 %v467
  %vm474 = vweird.f32 %v468
  %vm475 = vmor %vm473, %vm474
  %v476 = vsel %vm475, %v468, %v472
  %v477 = vand.u32 2147483647, %v467
  %vm478 = vcmp.eq.f32.partialorder %v477, 8.507059e+37
  %v479 = vand.u32 %v467, 2147483648
  %v480 = vor.u32 1.1754944e-38, %v479
  %v481 = vsel %vm478, %v480, %v476
  %v482 = vmul.f32 1.0, %v481
  %v483 = vtanh.pop %v463
  %v484 = vmul.f32 %v482, %v434
  %486 = vrot.lane.b32.xlu0 %v483, 64
  %v487 = vpop.permute.xlu0 %486
  %v489 = vmul.f32 %v482, %v487
  %491 = vrot.lane.b32.xlu0 %v489, 32
  %v492 = vpop.permute.xlu0 %491
  %v494 = vadd.f32 %v484, %v492
  %v495 = vtanh.pop %v494
  %497 = vrot.lane.b32.xlu0 %v495, 64
  %v498 = vpop.permute.xlu0 %497
  %v500 = vmul.f32 %v482, %v498
  %s501 = scalar_lea.vmem [#allocation2], 48
  %v502 = vld [vmem:[%s501] sm:$0xff]
  %v503 = vpack.c.bf16 %v500, %v500
  %505 = vrot.lane.b32.xlu0 %v503, 32
  %v506 = vpop.permute.xlu0 %505
  %v508 = vsel %vm73, %v506, 0
  %510 = vmatpush.bf16.msra.mxu0 0
  %511 = vmatpush.bf16.msra.mxu0 0
  %512 = vmatpush.bf16.msra.mxu0 0
  %513 = vmatpush.bf16.msra.mxu0 0
  %514 = vmatpush.bf16.msra.mxu0 0
  %515 = vmatpush.bf16.msra.mxu0 0
  %516 = vmatpush.bf16.msra.mxu0 %v140
  %517 = vmatpush.bf16.msra.mxu0 %v139
  %518 = vmatmul.bf16.gmra.mxu0 %v508
  %v519 = vpop.f32.mrf.mxu0
  %v520 = vadd.f32 0.0, %v519
  %v521 = vpop.f32.mrf.mxu0
  %522 = vdwg.mxu0
  %v523 = vadd.f32 %v502, %v520
  %v524 = vxor.u32 %v523, 2147483648
  %v525 = vmul.f32 %v524, 1.442695
  %v526 = vpow.pop %v525
  %v527 = vadd.f32 %v526, 1.0
  %v528 = vrcp.pop %v527
  %v529 = vmul.f32 %v527, %v528
  %v530 = vsub.f32 1.0, %v529
  %v531 = vmul.f32 %v528, %v530
  %v532 = vadd.f32 %v528, %v531
  %vm533 = vweird.f32 %v527
  %vm534 = vweird.f32 %v528
  %vm535 = vmor %vm533, %vm534
  %v536 = vsel %vm535, %v528, %v532
  %v537 = vand.u32 2147483647, %v527
  %vm538 = vcmp.eq.f32.partialorder %v537, 8.507059e+37
  %v539 = vand.u32 %v527, 2147483648
  %v540 = vor.u32 1.1754944e-38, %v539
  %v541 = vsel %vm538, %v540, %v536
  %v542 = vmul.f32 1.0, %v541
  %v543 = vtanh.pop %v523
  %v544 = vmul.f32 %v542, %v494
  %546 = vrot.lane.b32.xlu0 %v543, 64
  %v547 = vpop.permute.xlu0 %546
  %v549 = vmul.f32 %v542, %v547
  %551 = vrot.lane.b32.xlu0 %v549, 32
  %v552 = vpop.permute.xlu0 %551
  %v554 = vadd.f32 %v544, %v552
  %v555 = vtanh.pop %v554
  %557 = vrot.lane.b32.xlu0 %v555, 64
  %v558 = vpop.permute.xlu0 %557
  %v560 = vmul.f32 %v542, %v558
  %s561 = scalar_lea.vmem [#allocation2], 56
  %v562 = vld [vmem:[%s561] sm:$0xff]
  %v563 = vpack.c.bf16 %v560, %v560
  %565 = vrot.lane.b32.xlu0 %v563, 32
  %v566 = vpop.permute.xlu0 %565
  %v568 = vsel %vm73, %v566, 0
  %570 = vmatpush.bf16.msra.mxu0 0
  %571 = vmatpush.bf16.msra.mxu0 0
  %572 = vmatpush.bf16.msra.mxu0 0
  %573 = vmatpush.bf16.msra.mxu0 0
  %574 = vmatpush.bf16.msra.mxu0 0
  %575 = vmatpush.bf16.msra.mxu0 0
  %576 = vmatpush.bf16.msra.mxu0 %v140
  %577 = vmatpush.bf16.msra.mxu0 %v139
  %578 = vmatmul.bf16.gmra.mxu0 %v568
  %v579 = vpop.f32.mrf.mxu0
  %v580 = vadd.f32 0.0, %v579
  %v581 = vpop.f32.mrf.mxu0
  %582 = vdwg.mxu0
  %v583 = vadd.f32 %v562, %v580
  %v584 = vxor.u32 %v583, 2147483648
  %v585 = vmul.f32 %v584, 1.442695
  %v586 = vpow.pop %v585
  %v587 = vadd.f32 %v586, 1.0
  %v588 = vrcp.pop %v587
  %v589 = vmul.f32 %v587, %v588
  %v590 = vsub.f32 1.0, %v589
  %v591 = vmul.f32 %v588, %v590
  %v592 = vadd.f32 %v588, %v591
  %vm593 = vweird.f32 %v587
  %vm594 = vweird.f32 %v588
  %vm595 = vmor %vm593, %vm594
  %v596 = vsel %vm595, %v588, %v592
  %v597 = vand.u32 2147483647, %v587
  %vm598 = vcmp.eq.f32.partialorder %v597, 8.507059e+37
  %v599 = vand.u32 %v587, 2147483648
  %v600 = vor.u32 1.1754944e-38, %v599
  %v601 = vsel %vm598, %v600, %v596
  %v602 = vmul.f32 1.0, %v601
  %v603 = vtanh.pop %v583
  %v604 = vmul.f32 %v602, %v554
  %606 = vrot.lane.b32.xlu0 %v603, 64
  %v607 = vpop.permute.xlu0 %606
  %v609 = vmul.f32 %v602, %v607
  %611 = vrot.lane.b32.xlu0 %v609, 32
  %v612 = vpop.permute.xlu0 %611
  %v614 = vadd.f32 %v604, %v612
  %v615 = vtanh.pop %v614
  %617 = vrot.lane.b32.xlu0 %v615, 64
  %v618 = vpop.permute.xlu0 %617
  %v620 = vmul.f32 %v602, %v618
  %622 = vrot.lane.b32.xlu0 %v620, 32
  %v623 = vpop.permute.xlu0 %622
  %625 = vst.msk [vmem:[#allocation3] sm:$0xff] %vm73, %v623
  %627 = vrot.lane.b32.xlu0 %v614, 96
  %v628 = vpop.permute.xlu0 %627
  %630 = vst.msk [vmem:[#allocation4] sm:$0xff] %vm73, %v628
  // Predicated region
  $region22: #{lstm_graph_forward.3} parent=0 // pred_check
    %p631 = pneg %p18
  $region23: #{lstm_graph_forward.3} parent=0 // pred_check_branch
    %633 = sbr.rel (%p631) target = $region25
  $region24: #{lstm_graph_forward.3} parent=0 // pred_region
    %634 = vst.msk [vmem:[%s4] sm:$0xff] %vm73, %v623
  $region25: #{lstm_graph_forward.3} parent=0 // pred_fallthru
    _
  // Predicated region
  $region26: #{lstm_graph_forward.3} parent=0 // pred_check
    _
  $region27: #{lstm_graph_forward.3} parent=0 // pred_check_branch
    %636 = sbr.rel (0) target = $region29
  $region28: #{lstm_graph_forward.3} parent=0 // pred_region
    _
  $region29: #{lstm_graph_forward.3} parent=0 // pred_fallthru
    _
  // Predicated region
  $region30: #{lstm_graph_forward.3} parent=0 // pred_check
    _
  $region31: #{lstm_graph_forward.3} parent=0 // pred_check_branch
    %638 = sbr.rel (0) target = $region33
  $region32: #{lstm_graph_forward.3} parent=0 // pred_region
    _
  $region33: #{lstm_graph_forward.3} parent=0 // pred_fallthru
    _

</llo_original>
